<compile_context>
chip_gen: v7x
topology: tpu7x:2x2x1
jax: 0.10.0
libtpu: 0.0.40
codegen_flags: <defaults>
</compile_context>

<pallas_src>
import numpy as np

import jax
import jax.numpy as jnp
from jax.experimental import pallas as pl
from jax.experimental.pallas import tpu as pltpu


# --------------------------------------------------------------------------
# Fused kernel: conv1(+ReLU) -> conv2(+ReLU) -> global-avg-pool -> projection
# One grid step == one image; everything stays in VMEM / vregs.
# --------------------------------------------------------------------------
def _fused_encoder_kernel(x_ref, sel1_ref, a1_ref, b1_ref,
                          sel2_ref, a2_ref, b2_ref,
                          pool_ref, wp_ref, bp_ref, o_ref):
    f32 = jnp.float32
    bf16 = jnp.bfloat16

    x = x_ref[...]                                  # (H, W*Cin)  bf16

    h1 = sel1_ref.shape[0] // 3                     # stage-1 output rows
    k1 = a1_ref.shape[0] // 3                       # stage-1 contraction (W*Cin)
    n1 = a1_ref.shape[1]                            # W1*C1 (lane-dense)
    h2 = sel2_ref.shape[0] // 3
    k2 = a2_ref.shape[0] // 3
    n2 = a2_ref.shape[1]

    # ---- stage 1: 3x3 conv, stride 1, pad 1, + ReLU (3 MXU matmuls) ----
    acc1 = jnp.zeros((h1, n1), f32)
    for i in range(3):                              # unrolled kernel-row taps
        rows = jnp.dot(sel1_ref[i * h1:(i + 1) * h1, :], x,
                       preferred_element_type=f32).astype(bf16)   # row shift
        acc1 = acc1 + jnp.dot(rows, a1_ref[i * k1:(i + 1) * k1, :],
                              preferred_element_type=f32)
    y1 = jnp.maximum(acc1 + b1_ref[...], 0.0).astype(bf16)        # (h1, W1*C1)

    # ---- stage 2: 3x3 conv, stride 2, pad 1, + ReLU (3 MXU matmuls) ----
    acc2 = jnp.zeros((h2, n2), f32)
    for i in range(3):
        rows = jnp.dot(sel2_ref[i * h2:(i + 1) * h2, :], y1,
                       preferred_element_type=f32).astype(bf16)   # strided rows
        acc2 = acc2 + jnp.dot(rows, a2_ref[i * k2:(i + 1) * k2, :],
                              preferred_element_type=f32)
    y2 = jnp.maximum(acc2 + b2_ref[...], 0.0).astype(bf16)        # (h2, W2*C2)

    # ---- stage 3: global average pool + projection, both on the MXU ----
    pooled = jnp.dot(pool_ref[...], y2, preferred_element_type=f32)  # (1, W2*C2)
    feats = jnp.dot(pooled.astype(bf16), wp_ref[...],
                    preferred_element_type=f32) + bp_ref[...]        # (1, Dpad)
    o_ref[...] = feats.astype(o_ref.dtype)


# --------------------------------------------------------------------------
# Wrapper-side weight folding (tiny, done once; no activation duplication)
# --------------------------------------------------------------------------
def _shift_mask(n_in, n_out, stride, pad, k):
    """m[j, i, o] = 1  iff  i == stride*o + j - pad  (valid i only)."""
    m = np.zeros((k, n_in, n_out), np.float32)
    for j in range(k):
        for o in range(n_out):
            i = stride * o + j - pad
            if 0 <= i < n_in:
                m[j, i, o] = 1.0
    return m


def _fold_conv_weights(w, mask):
    """w: (k,k,cin,cout) HWIO; mask: (k, W_in, W_out) column shift mask.
    Returns (k*W_in*cin, W_out*cout): kw/cin/stride/pad folded into a dense
    matmul matrix per kernel-row tap (stacked along rows)."""
    k, n_in, n_out = mask.shape
    _, _, cin, cout = w.shape
    a = jnp.einsum('jpq,ijcd->ipcqd', jnp.asarray(mask), w)
    return a.reshape(k * n_in * cin, n_out * cout)


def init_params(key, c_in=4, c1=16, c2=32, d=64):
    k1, k2, k3, k4, k5, k6 = jax.random.split(key, 6)
    return dict(
        # conv weights stored HWIO (kh, kw, c_in, c_out)
        w1=jax.random.normal(k1, (3, 3, c_in, c1), jnp.float32) * 0.1,
        b1=jax.random.normal(k2, (1, c1), jnp.float32) * 0.01,
        w2=jax.random.normal(k3, (3, 3, c1, c2), jnp.float32) * 0.1,
        b2=jax.random.normal(k4, (1, c2), jnp.float32) * 0.01,
        wp=jax.random.normal(k5, (c2, d), jnp.float32) * 0.1,
        bp=jax.random.normal(k6, (1, d), jnp.float32) * 0.01,
    )


def mammo_clip_forward(x_nchw, params):
    """Forward: x (B, C, H, W) NCHW float32 -> image_features (B, D)."""
    B, Cin, H, W = x_nchw.shape
    k = 3
    c1 = params['w1'].shape[-1]
    c2 = params['w2'].shape[-1]
    d = params['wp'].shape[-1]
    H1, W1 = (H + 2 - k) // 1 + 1, (W + 2 - k) // 1 + 1        # stride 1, pad 1
    H2, W2 = (H1 + 2 - k) // 2 + 1, (W1 + 2 - k) // 2 + 1      # stride 2, pad 1
    dpad = max(128, -(-d // 128) * 128)                        # lane-dense out

    # -- fold the tiny conv weights into per-row-tap dense matmul matrices --
    mw1, mh1 = _shift_mask(W, W1, 1, 1, k), _shift_mask(H, H1, 1, 1, k)
    mw2, mh2 = _shift_mask(W1, W2, 2, 1, k), _shift_mask(H1, H2, 2, 1, k)

    a1 = _fold_conv_weights(params['w1'], mw1).astype(jnp.bfloat16)  # (3*W*Cin, W1*c1)
    a2 = _fold_conv_weights(params['w2'], mw2).astype(jnp.bfloat16)  # (3*W1*c1, W2*c2)
    sel1 = jnp.asarray(np.transpose(mh1, (0, 2, 1)).reshape(k * H1, H),
                       dtype=jnp.bfloat16)                           # (3*H1, H)
    sel2 = jnp.asarray(np.transpose(mh2, (0, 2, 1)).reshape(k * H2, H1),
                       dtype=jnp.bfloat16)                           # (3*H2, H1)
    b1t = jnp.tile(params['b1'], (1, W1)).astype(jnp.float32)        # (1, W1*c1)
    b2t = jnp.tile(params['b2'], (1, W2)).astype(jnp.float32)        # (1, W2*c2)
    pool = jnp.full((1, H2), 1.0 / (H2 * W2), jnp.bfloat16)          # (1, H2)
    wp_big = jnp.pad(jnp.tile(params['wp'], (W2, 1)),
                     ((0, 0), (0, dpad - d))).astype(jnp.bfloat16)   # (W2*c2, dpad)
    bp_pad = jnp.pad(params['bp'], ((0, 0), (0, dpad - d))).astype(jnp.float32)

    # -- activations: NCHW -> channel-last (B, H, W*Cin), bf16 --
    x2d = jnp.transpose(x_nchw, (0, 2, 3, 1)).reshape(B, H, W * Cin)
    x2d = x2d.astype(jnp.bfloat16)

    out = pl.pallas_call(
        _fused_encoder_kernel,
        out_shape=jax.ShapeDtypeStruct((B, 1, dpad), jnp.float32),
        grid=(B,),
        in_specs=[
            pl.BlockSpec((None, H, W * Cin), lambda b: (b, 0, 0)),
            pl.BlockSpec(sel1.shape, lambda b: (0, 0)),
            pl.BlockSpec(a1.shape, lambda b: (0, 0)),
            pl.BlockSpec(b1t.shape, lambda b: (0, 0)),
            pl.BlockSpec(sel2.shape, lambda b: (0, 0)),
            pl.BlockSpec(a2.shape, lambda b: (0, 0)),
            pl.BlockSpec(b2t.shape, lambda b: (0, 0)),
            pl.BlockSpec(pool.shape, lambda b: (0, 0)),
            pl.BlockSpec(wp_big.shape, lambda b: (0, 0)),
            pl.BlockSpec(bp_pad.shape, lambda b: (0, 0)),
        ],
        out_specs=pl.BlockSpec((None, 1, dpad), lambda b: (b, 0, 0)),
        compiler_params=pltpu.CompilerParams(
            dimension_semantics=("parallel",)),
    )(x2d, sel1, a1, b1t, sel2, a2, b2t, pool, wp_big, bp_pad)

    return out.reshape(B, dpad)[:, :d]


if __name__ == "__main__":
    key = jax.random.PRNGKey(0)
    kx, kp = jax.random.split(key)

    x = jax.random.normal(kx, (2, 4, 16, 16), jnp.float32)   # NCHW
    params = init_params(kp)

    out = jax.jit(mammo_clip_forward)(x, params)
    out = jax.block_until_ready(out)
    assert out.shape == (2, 64), out.shape

    # pure-JAX reference (weights/activations rounded to bf16 like the kernel)
    bf = lambda a: a.astype(jnp.bfloat16).astype(jnp.float32)
    xn = bf(jnp.transpose(x, (0, 2, 3, 1)))
    r1 = jax.nn.relu(jax.lax.conv_general_dilated(
        xn, bf(params['w1']), (1, 1), [(1, 1), (1, 1)],
        dimension_numbers=("NHWC", "HWIO", "NHWC")) + params['b1'][0])
    r2 = jax.nn.relu(jax.lax.conv_general_dilated(
        bf(r1), bf(params['w2']), (2, 2), [(1, 1), (1, 1)],
        dimension_numbers=("NHWC", "HWIO", "NHWC")) + params['b2'][0])
    ref = jnp.mean(bf(r2), axis=(1, 2)) @ bf(params['wp']) + params['bp'][0]

    err = float(jnp.max(jnp.abs(out - ref)))
    assert jnp.allclose(out, ref, atol=2e-2, rtol=2e-2), err

    print("KERNEL_OK")
</pallas_src>

<mosaic_0001>
module attributes {stable_mosaic.version = 11 : i64} {
  func.func @_fused_encoder_kernel(%arg0: i32, %arg1: memref<1x16x64xbf16, #tpu.memory_space<vmem>>, %arg2: memref<48x16xbf16, #tpu.memory_space<vmem>>, %arg3: memref<192x256xbf16, #tpu.memory_space<vmem>>, %arg4: memref<1x256xf32, #tpu.memory_space<vmem>>, %arg5: memref<24x16xbf16, #tpu.memory_space<vmem>>, %arg6: memref<768x256xbf16, #tpu.memory_space<vmem>>, %arg7: memref<1x256xf32, #tpu.memory_space<vmem>>, %arg8: memref<1x8xbf16, #tpu.memory_space<vmem>>, %arg9: memref<256x128xbf16, #tpu.memory_space<vmem>>, %arg10: memref<1x128xf32, #tpu.memory_space<vmem>>, %arg11: memref<1x1x128xf32, #tpu.memory_space<vmem>>) attributes {dimension_semantics = [#tpu.dimension_semantics<parallel>], iteration_bounds = array<i64: 2>, scalar_prefetch = 0 : i64, scratch_operands = 0 : i64, tpu.core_type = #tpu.core_type<tc>, window_params = [{transform_indices = @transform_0, window_bounds = array<i64: 1, 16, 64>}, {pipeline_mode = #tpu.pipeline_mode<synchronous>, transform_indices = @transform_1, window_bounds = array<i64: 48, 16>}, {pipeline_mode = #tpu.pipeline_mode<synchronous>, transform_indices = @transform_2, window_bounds = array<i64: 192, 256>}, {pipeline_mode = #tpu.pipeline_mode<synchronous>, transform_indices = @transform_3, window_bounds = array<i64: 1, 256>}, {pipeline_mode = #tpu.pipeline_mode<synchronous>, transform_indices = @transform_4, window_bounds = array<i64: 24, 16>}, {pipeline_mode = #tpu.pipeline_mode<synchronous>, transform_indices = @transform_5, window_bounds = array<i64: 768, 256>}, {pipeline_mode = #tpu.pipeline_mode<synchronous>, transform_indices = @transform_6, window_bounds = array<i64: 1, 256>}, {pipeline_mode = #tpu.pipeline_mode<synchronous>, transform_indices = @transform_7, window_bounds = array<i64: 1, 8>}, {pipeline_mode = #tpu.pipeline_mode<synchronous>, transform_indices = @transform_8, window_bounds = array<i64: 256, 128>}, {pipeline_mode = #tpu.pipeline_mode<synchronous>, transform_indices = @transform_9, window_bounds = array<i64: 1, 128>}, {transform_indices = @transform_10, window_bounds = array<i64: 1, 1, 128>}]} {
    %c0 = arith.constant 0 : index
    %c0_0 = arith.constant 0 : index
    %c0_1 = arith.constant 0 : index
    %0 = vector.load %arg1[%c0, %c0_0, %c0_1] : memref<1x16x64xbf16, #tpu.memory_space<vmem>>, vector<1x16x64xbf16>
    %1 = vector.shape_cast %0 : vector<1x16x64xbf16> to vector<16x64xbf16>
    %cst = arith.constant 0.000000e+00 : f32
    %2 = vector.broadcast %cst : f32 to vector<16x256xf32>
    %c0_2 = arith.constant 0 : index
    %c0_3 = arith.constant 0 : index
    %3 = vector.load %arg2[%c0_2, %c0_3] : memref<48x16xbf16, #tpu.memory_space<vmem>>, vector<16x16xbf16>
    %cst_4 = arith.constant dense<0.000000e+00> : vector<16x64xf32>
    %4 = tpu.matmul %3, %1, %cst_4 {dimension_numbers = #tpu.dot_dimension_numbers<[1], [0], [0], [1], [0, 0, 1, 1], [], []>} : vector<16x16xbf16>, vector<16x64xbf16>, vector<16x64xf32> -> vector<16x64xf32>
    %5 = arith.truncf %4 : vector<16x64xf32> to vector<16x64xbf16>
    %c0_5 = arith.constant 0 : index
    %c0_6 = arith.constant 0 : index
    %6 = vector.load %arg3[%c0_5, %c0_6] : memref<192x256xbf16, #tpu.memory_space<vmem>>, vector<64x256xbf16>
    %cst_7 = arith.constant dense<0.000000e+00> : vector<16x256xf32>
    %7 = tpu.matmul %5, %6, %cst_7 {dimension_numbers = #tpu.dot_dimension_numbers<[1], [0], [0], [1], [0, 0, 1, 1], [], []>} : vector<16x64xbf16>, vector<64x256xbf16>, vector<16x256xf32> -> vector<16x256xf32>
    %8 = arith.addf %2, %7 : vector<16x256xf32>
    %c16 = arith.constant 16 : index
    %c0_8 = arith.constant 0 : index
    %9 = vector.load %arg2[%c16, %c0_8] : memref<48x16xbf16, #tpu.memory_space<vmem>>, vector<16x16xbf16>
    %cst_9 = arith.constant dense<0.000000e+00> : vector<16x64xf32>
    %10 = tpu.matmul %9, %1, %cst_9 {dimension_numbers = #tpu.dot_dimension_numbers<[1], [0], [0], [1], [0, 0, 1, 1], [], []>} : vector<16x16xbf16>, vector<16x64xbf16>, vector<16x64xf32> -> vector<16x64xf32>
    %11 = arith.truncf %10 : vector<16x64xf32> to vector<16x64xbf16>
    %c64 = arith.constant 64 : index
    %c0_10 = arith.constant 0 : index
    %12 = vector.load %arg3[%c64, %c0_10] : memref<192x256xbf16, #tpu.memory_space<vmem>>, vector<64x256xbf16>
    %cst_11 = arith.constant dense<0.000000e+00> : vector<16x256xf32>
    %13 = tpu.matmul %11, %12, %cst_11 {dimension_numbers = #tpu.dot_dimension_numbers<[1], [0], [0], [1], [0, 0, 1, 1], [], []>} : vector<16x64xbf16>, vector<64x256xbf16>, vector<16x256xf32> -> vector<16x256xf32>
    %14 = arith.addf %8, %13 : vector<16x256xf32>
    %c32 = arith.constant 32 : index
    %c0_12 = arith.constant 0 : index
    %15 = vector.load %arg2[%c32, %c0_12] : memref<48x16xbf16, #tpu.memory_space<vmem>>, vector<16x16xbf16>
    %cst_13 = arith.constant dense<0.000000e+00> : vector<16x64xf32>
    %16 = tpu.matmul %15, %1, %cst_13 {dimension_numbers = #tpu.dot_dimension_numbers<[1], [0], [0], [1], [0, 0, 1, 1], [], []>} : vector<16x16xbf16>, vector<16x64xbf16>, vector<16x64xf32> -> vector<16x64xf32>
    %17 = arith.truncf %16 : vector<16x64xf32> to vector<16x64xbf16>
    %c128 = arith.constant 128 : index
    %c0_14 = arith.constant 0 : index
    %18 = vector.load %arg3[%c128, %c0_14] : memref<192x256xbf16, #tpu.memory_space<vmem>>, vector<64x256xbf16>
    %cst_15 = arith.constant dense<0.000000e+00> : vector<16x256xf32>
    %19 = tpu.matmul %17, %18, %cst_15 {dimension_numbers = #tpu.dot_dimension_numbers<[1], [0], [0], [1], [0, 0, 1, 1], [], []>} : vector<16x64xbf16>, vector<64x256xbf16>, vector<16x256xf32> -> vector<16x256xf32>
    %20 = arith.addf %14, %19 : vector<16x256xf32>
    %c0_16 = arith.constant 0 : index
    %c0_17 = arith.constant 0 : index
    %21 = vector.load %arg4[%c0_16, %c0_17] : memref<1x256xf32, #tpu.memory_space<vmem>>, vector<1x256xf32>
    %22 = vector.broadcast %21 : vector<1x256xf32> to vector<16x256xf32>
    %23 = arith.addf %20, %22 : vector<16x256xf32>
    %cst_18 = arith.constant 0.000000e+00 : f32
    %24 = vector.broadcast %cst_18 : f32 to vector<16x256xf32>
    %25 = arith.maximumf %23, %24 : vector<16x256xf32>
    %26 = arith.truncf %25 : vector<16x256xf32> to vector<16x256xbf16>
    %cst_19 = arith.constant 0.000000e+00 : f32
    %27 = vector.broadcast %cst_19 : f32 to vector<8x256xf32>
    %c0_20 = arith.constant 0 : index
    %c0_21 = arith.constant 0 : index
    %28 = vector.load %arg5[%c0_20, %c0_21] : memref<24x16xbf16, #tpu.memory_space<vmem>>, vector<8x16xbf16>
    %cst_22 = arith.constant dense<0.000000e+00> : vector<8x256xf32>
    %29 = tpu.matmul %28, %26, %cst_22 {dimension_numbers = #tpu.dot_dimension_numbers<[1], [0], [0], [1], [0, 0, 1, 1], [], []>} : vector<8x16xbf16>, vector<16x256xbf16>, vector<8x256xf32> -> vector<8x256xf32>
    %30 = arith.truncf %29 : vector<8x256xf32> to vector<8x256xbf16>
    %c0_23 = arith.constant 0 : index
    %c0_24 = arith.constant 0 : index
    %31 = vector.load %arg6[%c0_23, %c0_24] : memref<768x256xbf16, #tpu.memory_space<vmem>>, vector<256x256xbf16>
    %cst_25 = arith.constant dense<0.000000e+00> : vector<8x256xf32>
    %32 = tpu.matmul %30, %31, %cst_25 {dimension_numbers = #tpu.dot_dimension_numbers<[1], [0], [0], [1], [0, 0, 1, 1], [], []>} : vector<8x256xbf16>, vector<256x256xbf16>, vector<8x256xf32> -> vector<8x256xf32>
    %33 = arith.addf %27, %32 : vector<8x256xf32>
    %c8 = arith.constant 8 : index
    %c0_26 = arith.constant 0 : index
    %34 = vector.load %arg5[%c8, %c0_26] : memref<24x16xbf16, #tpu.memory_space<vmem>>, vector<8x16xbf16>
    %cst_27 = arith.constant dense<0.000000e+00> : vector<8x256xf32>
    %35 = tpu.matmul %34, %26, %cst_27 {dimension_numbers = #tpu.dot_dimension_numbers<[1], [0], [0], [1], [0, 0, 1, 1], [], []>} : vector<8x16xbf16>, vector<16x256xbf16>, vector<8x256xf32> -> vector<8x256xf32>
    %36 = arith.truncf %35 : vector<8x256xf32> to vector<8x256xbf16>
    %c256 = arith.constant 256 : index
    %c0_28 = arith.constant 0 : index
    %37 = vector.load %arg6[%c256, %c0_28] : memref<768x256xbf16, #tpu.memory_space<vmem>>, vector<256x256xbf16>
    %cst_29 = arith.constant dense<0.000000e+00> : vector<8x256xf32>
    %38 = tpu.matmul %36, %37, %cst_29 {dimension_numbers = #tpu.dot_dimension_numbers<[1], [0], [0], [1], [0, 0, 1, 1], [], []>} : vector<8x256xbf16>, vector<256x256xbf16>, vector<8x256xf32> -> vector<8x256xf32>
    %39 = arith.addf %33, %38 : vector<8x256xf32>
    %c16_30 = arith.constant 16 : index
    %c0_31 = arith.constant 0 : index
    %40 = vector.load %arg5[%c16_30, %c0_31] : memref<24x16xbf16, #tpu.memory_space<vmem>>, vector<8x16xbf16>
    %cst_32 = arith.constant dense<0.000000e+00> : vector<8x256xf32>
    %41 = tpu.matmul %40, %26, %cst_32 {dimension_numbers = #tpu.dot_dimension_numbers<[1], [0], [0], [1], [0, 0, 1, 1], [], []>} : vector<8x16xbf16>, vector<16x256xbf16>, vector<8x256xf32> -> vector<8x256xf32>
    %42 = arith.truncf %41 : vector<8x256xf32> to vector<8x256xbf16>
    %c512 = arith.constant 512 : index
    %c0_33 = arith.constant 0 : index
    %43 = vector.load %arg6[%c512, %c0_33] : memref<768x256xbf16, #tpu.memory_space<vmem>>, vector<256x256xbf16>
    %cst_34 = arith.constant dense<0.000000e+00> : vector<8x256xf32>
    %44 = tpu.matmul %42, %43, %cst_34 {dimension_numbers = #tpu.dot_dimension_numbers<[1], [0], [0], [1], [0, 0, 1, 1], [], []>} : vector<8x256xbf16>, vector<256x256xbf16>, vector<8x256xf32> -> vector<8x256xf32>
    %45 = arith.addf %39, %44 : vector<8x256xf32>
    %c0_35 = arith.constant 0 : index
    %c0_36 = arith.constant 0 : index
    %46 = vector.load %arg7[%c0_35, %c0_36] : memref<1x256xf32, #tpu.memory_space<vmem>>, vector<1x256xf32>
    %47 = vector.broadcast %46 : vector<1x256xf32> to vector<8x256xf32>
    %48 = arith.addf %45, %47 : vector<8x256xf32>
    %cst_37 = arith.constant 0.000000e+00 : f32
    %49 = vector.broadcast %cst_37 : f32 to vector<8x256xf32>
    %50 = arith.maximumf %48, %49 : vector<8x256xf32>
    %51 = arith.truncf %50 : vector<8x256xf32> to vector<8x256xbf16>
    %c0_38 = arith.constant 0 : index
    %c0_39 = arith.constant 0 : index
    %52 = vector.load %arg8[%c0_38, %c0_39] : memref<1x8xbf16, #tpu.memory_space<vmem>>, vector<1x8xbf16>
    %cst_40 = arith.constant dense<0.000000e+00> : vector<1x256xf32>
    %53 = tpu.matmul %52, %51, %cst_40 {dimension_numbers = #tpu.dot_dimension_numbers<[1], [0], [0], [1], [0, 0, 1, 1], [], []>} : vector<1x8xbf16>, vector<8x256xbf16>, vector<1x256xf32> -> vector<1x256xf32>
    %54 = arith.truncf %53 : vector<1x256xf32> to vector<1x256xbf16>
    %c0_41 = arith.constant 0 : index
    %c0_42 = arith.constant 0 : index
    %55 = vector.load %arg9[%c0_41, %c0_42] : memref<256x128xbf16, #tpu.memory_space<vmem>>, vector<256x128xbf16>
    %cst_43 = arith.constant dense<0.000000e+00> : vector<1x128xf32>
    %56 = tpu.matmul %54, %55, %cst_43 {dimension_numbers = #tpu.dot_dimension_numbers<[1], [0], [0], [1], [0, 0, 1, 1], [], []>} : vector<1x256xbf16>, vector<256x128xbf16>, vector<1x128xf32> -> vector<1x128xf32>
    %c0_44 = arith.constant 0 : index
    %c0_45 = arith.constant 0 : index
    %57 = vector.load %arg10[%c0_44, %c0_45] : memref<1x128xf32, #tpu.memory_space<vmem>>, vector<1x128xf32>
    %58 = arith.addf %56, %57 : vector<1x128xf32>
    %c0_46 = arith.constant 0 : index
    %c0_47 = arith.constant 0 : index
    %c0_48 = arith.constant 0 : index
    %59 = vector.load %arg11[%c0_46, %c0_47, %c0_48] : memref<1x1x128xf32, #tpu.memory_space<vmem>>, vector<1x1x128xf32>
    %60 = vector.shape_cast %59 : vector<1x1x128xf32> to vector<1x128xf32>
    %61 = vector.shape_cast %58 : vector<1x128xf32> to vector<1x1x128xf32>
    tpu.vector_store %arg11[%c0_46, %c0_47, %c0_48], %61 {strides = array<i32>} : memref<1x1x128xf32, #tpu.memory_space<vmem>>, vector<1x1x128xf32>,
    return
  }
  func.func @transform_0(%arg0: i32) -> (i32, i32, i32) {
    %c0_i32 = arith.constant 0 : i32
    %c0_i32_0 = arith.constant 0 : i32
    %c0_i32_1 = arith.constant 0 : i32
    return %arg0, %c0_i32, %c0_i32_0 : i32, i32, i32
  }
  func.func @transform_1(%arg0: i32) -> (i32, i32) {
    %c0_i32 = arith.constant 0 : i32
    %c0_i32_0 = arith.constant 0 : i32
    %c0_i32_1 = arith.constant 0 : i32
    return %c0_i32, %c0_i32_0 : i32, i32
  }
  func.func @transform_2(%arg0: i32) -> (i32, i32) {
    %c0_i32 = arith.constant 0 : i32
    %c0_i32_0 = arith.constant 0 : i32
    %c0_i32_1 = arith.constant 0 : i32
    return %c0_i32, %c0_i32_0 : i32, i32
  }
  func.func @transform_3(%arg0: i32) -> (i32, i32) {
    %c0_i32 = arith.constant 0 : i32
    %c0_i32_0 = arith.constant 0 : i32
    %c0_i32_1 = arith.constant 0 : i32
    return %c0_i32, %c0_i32_0 : i32, i32
  }
  func.func @transform_4(%arg0: i32) -> (i32, i32) {
    %c0_i32 = arith.constant 0 : i32
    %c0_i32_0 = arith.constant 0 : i32
    %c0_i32_1 = arith.constant 0 : i32
    return %c0_i32, %c0_i32_0 : i32, i32
  }
  func.func @transform_5(%arg0: i32) -> (i32, i32) {
    %c0_i32 = arith.constant 0 : i32
    %c0_i32_0 = arith.constant 0 : i32
    %c0_i32_1 = arith.constant 0 : i32
    return %c0_i32, %c0_i32_0 : i32, i32
  }
  func.func @transform_6(%arg0: i32) -> (i32, i32) {
    %c0_i32 = arith.constant 0 : i32
    %c0_i32_0 = arith.constant 0 : i32
    %c0_i32_1 = arith.constant 0 : i32
    return %c0_i32, %c0_i32_0 : i32, i32
  }
  func.func @transform_7(%arg0: i32) -> (i32, i32) {
    %c0_i32 = arith.constant 0 : i32
    %c0_i32_0 = arith.constant 0 : i32
    %c0_i32_1 = arith.constant 0 : i32
    return %c0_i32, %c0_i32_0 : i32, i32
  }
  func.func @transform_8(%arg0: i32) -> (i32, i32) {
    %c0_i32 = arith.constant 0 : i32
    %c0_i32_0 = arith.constant 0 : i32
    %c0_i32_1 = arith.constant 0 : i32
    return %c0_i32, %c0_i32_0 : i32, i32
  }
  func.func @transform_9(%arg0: i32) -> (i32, i32) {
    %c0_i32 = arith.constant 0 : i32
    %c0_i32_0 = arith.constant 0 : i32
    %c0_i32_1 = arith.constant 0 : i32
    return %c0_i32, %c0_i32_0 : i32, i32
  }
  func.func @transform_10(%arg0: i32) -> (i32, i32, i32) {
    %c0_i32 = arith.constant 0 : i32
    %c0_i32_0 = arith.constant 0 : i32
    %c0_i32_1 = arith.constant 0 : i32
    return %arg0, %c0_i32, %c0_i32_0 : i32, i32, i32
  }
}

</mosaic_0001>

<llo_original>
// kernel: mammo_clip_forward.1
$region0: #{mammo_clip_forward.1}
  #allocation0 [shape = 'u32[]', space=smem, size = 0x4, offset = 0x4, fixed_abs, tag = 'smem constant byte address 0x4 - core index']
  #allocation1 [shape = 'u32[144,128]{1,0:T(1,128)}', space=vmem, size = 0x12000, scoped, tag = 'internal scratch']
  %s0 = inlined_call_operand.vmem [shape: bf16[2,16,64], index: 0, kind: input, shape index: {}]
  %s1 = inlined_call_operand.vmem [shape: bf16[48,16], index: 1, kind: input, shape index: {}]
  %s2 = inlined_call_operand.vmem [shape: bf16[192,256], index: 2, kind: input, shape index: {}]
  %s3 = inlined_call_operand.vmem [shape: f32[1,256], index: 3, kind: input, shape index: {}]
  %s4 = inlined_call_operand.vmem [shape: bf16[24,16], index: 4, kind: input, shape index: {}]
  %s5 = inlined_call_operand.vmem [shape: bf16[768,256], index: 5, kind: input, shape index: {}]
  %s6 = inlined_call_operand.vmem [shape: f32[1,256], index: 6, kind: input, shape index: {}]
  %s7 = inlined_call_operand.vmem [shape: bf16[1,8], index: 7, kind: input, shape index: {}]
  %s8 = inlined_call_operand.vmem [shape: bf16[256,128], index: 8, kind: input, shape index: {}]
  %s9 = inlined_call_operand.vmem [shape: f32[1,128], index: 9, kind: input, shape index: {}]
  %s10 = inlined_call_operand.hbm [shape: f32[2,1,128], index: 10, kind: output, shape index: {}]
  %s11 = sld [smem:[#allocation0]]
  $region73: #{mammo_clip_forward.1} parent=0
    _
  %s13 = ssub.s32 1, %s11
  %s14 = scalar_select 0, %s13, %s11
  $region1: #{mammo_clip_forward.1} parent=0
    #allocation2 [shape = 'u8[1024]{0}', space=vmem, size = 0x400, scoped, tag = 'output window, operand 0']
    #allocation3 [shape = 's32[2]{0}', space=sflag, size = 0x8, scoped, tag = 'scoped memory for mammo_clip_forward.1']
    %15 = vsyncpa [#allocation3], 0
    %s16 = scalar_lea.sflag [#allocation3], 1
    %17 = vsyncpa %s16, 0
    loop: start=0, step=1, limit=4
    $region2: #{mammo_clip_forward.1} parent=1 // loop_pre_header
      _
    $region3: #{mammo_clip_forward.1} parent=1 // loop_header
      %s19 = sphi 0, %s23
      %p20 = scmp.ge.s32.totalorder %s19, 4
      %s29 = sphi 0, %s31
      %s32 = sphi 0, %s29
      %s33 = sphi 0, %s32
      %s49 = sphi 0, %s33
      %s53 = sphi 0, %s53
      %s55 = sphi 0, %s53
      %s56 = sphi 0, %s55
      %s70 = sphi 0, %s56
      %s74 = sphi 0, %s74
      %s76 = sphi 0, %s74
      %s77 = sphi 0, %s76
      %s91 = sphi 0, %s77
      %s95 = sphi 0, %s95
      %s97 = sphi 0, %s95
      %s98 = sphi 0, %s97
      %s112 = sphi 0, %s98
      %s116 = sphi 0, %s116
      %s118 = sphi 0, %s116
      %s119 = sphi 0, %s118
      %s133 = sphi 0, %s119
      %s137 = sphi 0, %s137
      %s139 = sphi 0, %s137
      %s140 = sphi 0, %s139
      %s154 = sphi 0, %s140
      %s158 = sphi 0, %s158
      %s160 = sphi 0, %s158
      %s161 = sphi 0, %s160
      %s175 = sphi 0, %s161
      %s179 = sphi 0, %s179
      %s181 = sphi 0, %s179
      %s182 = sphi 0, %s181
      %s196 = sphi 0, %s182
      %s200 = sphi 0, %s200
      %s202 = sphi 0, %s200
      %s203 = sphi 0, %s202
      %s217 = sphi 0, %s203
      %s221 = sphi 0, %s221
      %s223 = sphi 0, %s221
      %s224 = sphi 0, %s223
      %s238 = sphi 0, %s224
      %s244 = sphi 0, %s246
      %s247 = sphi 0, %s244
      %s248 = sphi 0, %s247
      %s264 = sphi 0, %s248
    $region4: #{mammo_clip_forward.1} parent=1 // loop_header_branch
      %22 = sbr.rel (%p20) target = $region8
    $region5: #{mammo_clip_forward.1} parent=1 // loop_body
      %s24 = ssub.s32 %s19, 1
      %s25 = ssub.s32 %s19, 2
      %s26 = sadd.s32 %s19, 1
      %s27 = ssub.s32 %s19, %s26
      %p28 = scmp.eq.s32.totalorder %s27, 0
      %s30 = sadd.s32 %s29, 1
      %s31 = scalar_select %p28, %s29, %s30
      %p34 = pneg %p28
      %p35 = scmp.eq.s32.totalorder %s19, 1
      %p36 = por %p34, %p35
      %p37 = scmp.ne.s32.totalorder %s29, %s32
      %p38 = scmp.eq.s32.totalorder %s19, 0
      %p39 = por %p37, %p38
      %p40 = scmp.ne.s32.totalorder %s29, %s32
      %p41 = scmp.eq.s32.totalorder %s24, 1
      %p42 = por %p40, %p41
      %p43 = scmp.ne.s32.totalorder %s32, %s33
      %p44 = scmp.eq.s32.totalorder %s24, 0
      %p45 = por %p43, %p44
      %p46 = scmp.ne.s32.totalorder %s32, %s33
      %p47 = scmp.eq.s32.totalorder %s25, 1
      %p48 = por %p46, %p47
      %p50 = scmp.ne.s32.totalorder %s33, %s49
      %p51 = scmp.eq.s32.totalorder %s25, 0
      %p52 = por %p50, %p51
      %s54 = sadd.s32 %s53, 1
      %p57 = scmp.eq.s32.totalorder %s19, 1
      %p58 = scmp.ne.s32.totalorder %s53, %s55
      %p59 = scmp.eq.s32.totalorder %s19, 0
      %p60 = por %p58, %p59
      %p61 = scmp.ne.s32.totalorder %s53, %s55
      %p62 = scmp.eq.s32.totalorder %s24, 1
      %p63 = por %p61, %p62
      %p64 = scmp.ne.s32.totalorder %s55, %s56
      %p65 = scmp.eq.s32.totalorder %s24, 0
      %p66 = por %p64, %p65
      %p67 = scmp.ne.s32.totalorder %s55, %s56
      %p68 = scmp.eq.s32.totalorder %s25, 1
      %p69 = por %p67, %p68
      %p71 = scmp.ne.s32.totalorder %s56, %s70
      %p72 = scmp.eq.s32.totalorder %s25, 0
      %p73 = por %p71, %p72
      %s75 = sadd.s32 %s74, 1
      %p78 = scmp.eq.s32.totalorder %s19, 1
      %p79 = scmp.ne.s32.totalorder %s74, %s76
      %p80 = scmp.eq.s32.totalorder %s19, 0
      %p81 = por %p79, %p80
      %p82 = scmp.ne.s32.totalorder %s74, %s76
      %p83 = scmp.eq.s32.totalorder %s24, 1
      %p84 = por %p82, %p83
      %p85 = scmp.ne.s32.totalorder %s76, %s77
      %p86 = scmp.eq.s32.totalorder %s24, 0
      %p87 = por %p85, %p86
      %p88 = scmp.ne.s32.totalorder %s76, %s77
      %p89 = scmp.eq.s32.totalorder %s25, 1
      %p90 = por %p88, %p89
      %p92 = scmp.ne.s32.totalorder %s77, %s91
      %p93 = scmp.eq.s32.totalorder %s25, 0
      %p94 = por %p92, %p93
      %s96 = sadd.s32 %s95, 1
      %p99 = scmp.eq.s32.totalorder %s19, 1
      %p100 = scmp.ne.s32.totalorder %s95, %s97
      %p101 = scmp.eq.s32.totalorder %s19, 0
      %p102 = por %p100, %p101
      %p103 = scmp.ne.s32.totalorder %s95, %s97
      %p104 = scmp.eq.s32.totalorder %s24, 1
      %p105 = por %p103, %p104
      %p106 = scmp.ne.s32.totalorder %s97, %s98
      %p107 = scmp.eq.s32.totalorder %s24, 0
      %p108 = por %p106, %p107
      %p109 = scmp.ne.s32.totalorder %s97, %s98
      %p110 = scmp.eq.s32.totalorder %s25, 1
      %p111 = por %p109, %p110
      %p113 = scmp.ne.s32.totalorder %s98, %s112
      %p114 = scmp.eq.s32.totalorder %s25, 0
      %p115 = por %p113, %p114
      %s117 = sadd.s32 %s116, 1
      %p120 = scmp.eq.s32.totalorder %s19, 1
      %p121 = scmp.ne.s32.totalorder %s116, %s118
      %p122 = scmp.eq.s32.totalorder %s19, 0
      %p123 = por %p121, %p122
      %p124 = scmp.ne.s32.totalorder %s116, %s118
      %p125 = scmp.eq.s32.totalorder %s24, 1
      %p126 = por %p124, %p125
      %p127 = scmp.ne.s32.totalorder %s118, %s119
      %p128 = scmp.eq.s32.totalorder %s24, 0
      %p129 = por %p127, %p128
      %p130 = scmp.ne.s32.totalorder %s118, %s119
      %p131 = scmp.eq.s32.totalorder %s25, 1
      %p132 = por %p130, %p131
      %p134 = scmp.ne.s32.totalorder %s119, %s133
      %p135 = scmp.eq.s32.totalorder %s25, 0
      %p136 = por %p134, %p135
      %s138 = sadd.s32 %s137, 1
      %p141 = scmp.eq.s32.totalorder %s19, 1
      %p142 = scmp.ne.s32.totalorder %s137, %s139
      %p143 = scmp.eq.s32.totalorder %s19, 0
      %p144 = por %p142, %p143
      %p145 = scmp.ne.s32.totalorder %s137, %s139
      %p146 = scmp.eq.s32.totalorder %s24, 1
      %p147 = por %p145, %p146
      %p148 = scmp.ne.s32.totalorder %s139, %s140
      %p149 = scmp.eq.s32.totalorder %s24, 0
      %p150 = por %p148, %p149
      %p151 = scmp.ne.s32.totalorder %s139, %s140
      %p152 = scmp.eq.s32.totalorder %s25, 1
      %p153 = por %p151, %p152
      %p155 = scmp.ne.s32.totalorder %s140, %s154
      %p156 = scmp.eq.s32.totalorder %s25, 0
      %p157 = por %p155, %p156
      %s159 = sadd.s32 %s158, 1
      %p162 = scmp.eq.s32.totalorder %s19, 1
      %p163 = scmp.ne.s32.totalorder %s158, %s160
      %p164 = scmp.eq.s32.totalorder %s19, 0
      %p165 = por %p163, %p164
      %p166 = scmp.ne.s32.totalorder %s158, %s160
      %p167 = scmp.eq.s32.totalorder %s24, 1
      %p168 = por %p166, %p167
      %p169 = scmp.ne.s32.totalorder %s160, %s161
      %p170 = scmp.eq.s32.totalorder %s24, 0
      %p171 = por %p169, %p170
      %p172 = scmp.ne.s32.totalorder %s160, %s161
      %p173 = scmp.eq.s32.totalorder %s25, 1
      %p174 = por %p172, %p173
      %p176 = scmp.ne.s32.totalorder %s161, %s175
      %p177 = scmp.eq.s32.totalorder %s25, 0
      %p178 = por %p176, %p177
      %s180 = sadd.s32 %s179, 1
      %p183 = scmp.eq.s32.totalorder %s19, 1
      %p184 = scmp.ne.s32.totalorder %s179, %s181
      %p185 = scmp.eq.s32.totalorder %s19, 0
      %p186 = por %p184, %p185
      %p187 = scmp.ne.s32.totalorder %s179, %s181
      %p188 = scmp.eq.s32.totalorder %s24, 1
      %p189 = por %p187, %p188
      %p190 = scmp.ne.s32.totalorder %s181, %s182
      %p191 = scmp.eq.s32.totalorder %s24, 0
      %p192 = por %p190, %p191
      %p193 = scmp.ne.s32.totalorder %s181, %s182
      %p194 = scmp.eq.s32.totalorder %s25, 1
      %p195 = por %p193, %p194
      %p197 = scmp.ne.s32.totalorder %s182, %s196
      %p198 = scmp.eq.s32.totalorder %s25, 0
      %p199 = por %p197, %p198
      %s201 = sadd.s32 %s200, 1
      %p204 = scmp.eq.s32.totalorder %s19, 1
      %p205 = scmp.ne.s32.totalorder %s200, %s202
      %p206 = scmp.eq.s32.totalorder %s19, 0
      %p207 = por %p205, %p206
      %p208 = scmp.ne.s32.totalorder %s200, %s202
      %p209 = scmp.eq.s32.totalorder %s24, 1
      %p210 = por %p208, %p209
      %p211 = scmp.ne.s32.totalorder %s202, %s203
      %p212 = scmp.eq.s32.totalorder %s24, 0
      %p213 = por %p211, %p212
      %p214 = scmp.ne.s32.totalorder %s202, %s203
      %p215 = scmp.eq.s32.totalorder %s25, 1
      %p216 = por %p214, %p215
      %p218 = scmp.ne.s32.totalorder %s203, %s217
      %p219 = scmp.eq.s32.totalorder %s25, 0
      %p220 = por %p218, %p219
      %s222 = sadd.s32 %s221, 1
      %p225 = scmp.eq.s32.totalorder %s19, 1
      %p226 = scmp.ne.s32.totalorder %s221, %s223
      %p227 = scmp.eq.s32.totalorder %s19, 0
      %p228 = por %p226, %p227
      %p229 = scmp.ne.s32.totalorder %s221, %s223
      %p230 = scmp.eq.s32.totalorder %s24, 1
      %p231 = por %p229, %p230
      %p232 = scmp.ne.s32.totalorder %s223, %s224
      %p233 = scmp.eq.s32.totalorder %s24, 0
      %p234 = por %p232, %p233
      %p235 = scmp.ne.s32.totalorder %s223, %s224
      %p236 = scmp.eq.s32.totalorder %s25, 1
      %p237 = por %p235, %p236
      %p239 = scmp.ne.s32.totalorder %s224, %s238
      %p240 = scmp.eq.s32.totalorder %s25, 0
      %p241 = por %p239, %p240
      %s242 = ssub.s32 %s19, %s26
      %p243 = scmp.eq.s32.totalorder %s242, 0
      %s245 = sadd.s32 %s244, 1
      %s246 = scalar_select %p243, %s244, %s245
      %p249 = pneg %p243
      %p250 = scmp.eq.s32.totalorder %s19, 1
      %p251 = por %p249, %p250
      %p252 = scmp.ne.s32.totalorder %s244, %s247
      %p253 = scmp.eq.s32.totalorder %s19, 0
      %p254 = por %p252, %p253
      %p255 = scmp.ne.s32.totalorder %s244, %s247
      %p256 = scmp.eq.s32.totalorder %s24, 1
      %p257 = por %p255, %p256
      %p258 = scmp.ne.s32.totalorder %s247, %s248
      %p259 = scmp.eq.s32.totalorder %s24, 0
      %p260 = por %p258, %p259
      %p261 = scmp.ne.s32.totalorder %s247, %s248
      %p262 = scmp.eq.s32.totalorder %s25, 1
      %p263 = por %p261, %p262
      %p265 = scmp.ne.s32.totalorder %s248, %s264
      %p266 = scmp.eq.s32.totalorder %s25, 0
      %p267 = por %p265, %p266
      %p268 = scmp.le.s32.totalorder 1, %s19
      %p269 = scmp.lt.s32.totalorder %s19, 3
      %p270 = pnand %p268, %p269
      %p271 = pneg %p270
      // Predicated region
      $region9: #{mammo_clip_forward.1} parent=5 // pred_check
        _
      $region10: #{mammo_clip_forward.1} parent=5 // pred_check_branch
        %273 = sbr.rel (%p270) target = $region12
      $region11: #{mammo_clip_forward.1} parent=5 // pred_region
        %s274 = ssub.s32 %s19, 1
        // Predicated region
        $region13: #{mammo_clip_forward.1} parent=11 // pred_check
          %p275 = pneg %p66
        $region14: #{mammo_clip_forward.1} parent=11 // pred_check_branch
          %277 = sbr.rel (%p275) target = $region16
        $region15: #{mammo_clip_forward.1} parent=11 // pred_region
          _
        $region16: #{mammo_clip_forward.1} parent=11 // pred_fallthru
          _
        // Predicated region
        $region17: #{mammo_clip_forward.1} parent=11 // pred_check
          %p278 = pneg %p87
        $region18: #{mammo_clip_forward.1} parent=11 // pred_check_branch
          %280 = sbr.rel (%p278) target = $region20
        $region19: #{mammo_clip_forward.1} parent=11 // pred_region
          _
        $region20: #{mammo_clip_forward.1} parent=11 // pred_fallthru
          _
        // Predicated region
        $region21: #{mammo_clip_forward.1} parent=11 // pred_check
          %p281 = pneg %p108
        $region22: #{mammo_clip_forward.1} parent=11 // pred_check_branch
          %283 = sbr.rel (%p281) target = $region24
        $region23: #{mammo_clip_forward.1} parent=11 // pred_region
          _
        $region24: #{mammo_clip_forward.1} parent=11 // pred_fallthru
          _
        // Predicated region
        $region25: #{mammo_clip_forward.1} parent=11 // pred_check
          %p284 = pneg %p129
        $region26: #{mammo_clip_forward.1} parent=11 // pred_check_branch
          %286 = sbr.rel (%p284) target = $region28
        $region27: #{mammo_clip_forward.1} parent=11 // pred_region
          _
        $region28: #{mammo_clip_forward.1} parent=11 // pred_fallthru
          _
        // Predicated region
        $region29: #{mammo_clip_forward.1} parent=11 // pred_check
          %p287 = pneg %p150
        $region30: #{mammo_clip_forward.1} parent=11 // pred_check_branch
          %289 = sbr.rel (%p287) target = $region32
        $region31: #{mammo_clip_forward.1} parent=11 // pred_region
          _
        $region32: #{mammo_clip_forward.1} parent=11 // pred_fallthru
          _
        // Predicated region
        $region33: #{mammo_clip_forward.1} parent=11 // pred_check
          %p290 = pneg %p171
        $region34: #{mammo_clip_forward.1} parent=11 // pred_check_branch
          %292 = sbr.rel (%p290) target = $region36
        $region35: #{mammo_clip_forward.1} parent=11 // pred_region
          _
        $region36: #{mammo_clip_forward.1} parent=11 // pred_fallthru
          _
        // Predicated region
        $region37: #{mammo_clip_forward.1} parent=11 // pred_check
          %p293 = pneg %p192
        $region38: #{mammo_clip_forward.1} parent=11 // pred_check_branch
          %295 = sbr.rel (%p293) target = $region40
        $region39: #{mammo_clip_forward.1} parent=11 // pred_region
          _
        $region40: #{mammo_clip_forward.1} parent=11 // pred_fallthru
          _
        // Predicated region
        $region41: #{mammo_clip_forward.1} parent=11 // pred_check
          %p296 = pneg %p213
        $region42: #{mammo_clip_forward.1} parent=11 // pred_check_branch
          %298 = sbr.rel (%p296) target = $region44
        $region43: #{mammo_clip_forward.1} parent=11 // pred_region
          _
        $region44: #{mammo_clip_forward.1} parent=11 // pred_fallthru
          _
        // Predicated region
        $region45: #{mammo_clip_forward.1} parent=11 // pred_check
          %p299 = pneg %p234
        $region46: #{mammo_clip_forward.1} parent=11 // pred_check_branch
          %301 = sbr.rel (%p299) target = $region48
        $region47: #{mammo_clip_forward.1} parent=11 // pred_region
          _
        $region48: #{mammo_clip_forward.1} parent=11 // pred_fallthru
          _
      $region12: #{mammo_clip_forward.1} parent=5 // pred_fallthru
        _
      %p302 = scmp.lt.s32.totalorder %s19, 2
      // Predicated region
      $region49: #{mammo_clip_forward.1} parent=5 // pred_check
        %p303 = pneg %p302
      $region50: #{mammo_clip_forward.1} parent=5 // pred_check_branch
        %305 = sbr.rel (%p303) target = $region52
      $region51: #{mammo_clip_forward.1} parent=5 // pred_region
        // Predicated region
        $region53: #{mammo_clip_forward.1} parent=51 // pred_check
          %p306 = pneg %p39
        $region54: #{mammo_clip_forward.1} parent=51 // pred_check_branch
          %308 = sbr.rel (%p306) target = $region56
        $region55: #{mammo_clip_forward.1} parent=51 // pred_region
          %p309 = scmp.lt.s32.totalorder %s19, 1
          %s310 = scalar_select %p309, %s19, 1
          %s311 = smul.addr %s310, 2
          %s312 = smul.addr %s311, 4
          %s313 = scalar_lea.vmem %s0, %s312
        $region56: #{mammo_clip_forward.1} parent=51 // pred_fallthru
          _
      $region52: #{mammo_clip_forward.1} parent=5 // pred_fallthru
        _
      %p314 = scmp.le.s32.totalorder 1, %s19
      %p315 = scmp.lt.s32.totalorder %s19, 3
      %p316 = pnand %p314, %p315
      %p317 = pneg %p316
      // Predicated region
      $region57: #{mammo_clip_forward.1} parent=5 // pred_check
        _
      $region58: #{mammo_clip_forward.1} parent=5 // pred_check_branch
        %319 = sbr.rel (%p316) target = $region60
      $region59: #{mammo_clip_forward.1} parent=5 // pred_region
        %s320 = ssub.s32 %s19, 1
        %p321 = scmp.lt.s32.totalorder %s24, 1
        %s322 = scalar_select %p321, %s24, 1
        %s323 = smul.addr %s322, 2
        %s324 = smul.addr %s323, 4
        %s325 = scalar_lea.vmem %s0, %s324
        %p326 = pneg %p45
        %p327 = pneg %p42
        %p328 = pneg %p66
        %p329 = pneg %p63
        %p330 = pneg %p87
        %p331 = pneg %p84
        %p332 = pneg %p108
        %p333 = pneg %p105
        %p334 = pneg %p129
        %p335 = pneg %p126
        %p336 = pneg %p150
        %p337 = pneg %p147
        %p338 = pneg %p171
        %p339 = pneg %p168
        %p340 = pneg %p192
        %p341 = pneg %p189
        %p342 = pneg %p213
        %p343 = pneg %p210
        %p344 = pneg %p234
        %p345 = pneg %p231
        %p346 = pneg %p260
        %p347 = pneg %p257
        %s348 = sand.u32 %s247, 1
        %s349 = scalar_lea.sflag [#allocation3], %s348
        %s350 = sand.u32 %s247, 1
        %s351 = scalar_lea.vmem [#allocation2], %s350
        %p352 = scmp.lt.s32.totalorder %s24, 1
        %s353 = scalar_select %p352, %s24, 1
        %s354 = smul.addr %s353, 2
        %s355 = smul.addr %s354, 4
        %s356 = scalar_lea.vmem %s0, %s355
        %v358 = vld [vmem:[%s356] sm:$0xf]
        %v359 = vld [vmem:[%s356 + $0x4] sm:$0xf]
        %v360 = vld [vmem:[%s1] sm:$0xf]
        %v361 = vld [vmem:[%s1 + $0x4] sm:$0xf]
        %v364 = vunpack.c.l.b16 %v360
        %v365 = vunpack.c.l.b16 %v361
        %v366 = vpack.c.b16 %v365, %v364
        %v369 = vunpack.c.l.b16 %v358
        %v370 = vunpack.c.l.b16 %v359
        %v371 = vpack.c.b16 %v370, %v369
        %vm373 = vcmask 130048
        %v375 = vsel %vm373, %v366, 0
        %377 = vmatprep.subr.bf16.mxu0 0
        %378 = vmatpush1.bf16.msra.mxu0 %v371
        %379 = vmatprep.subr.bf16.mxu0 0
        %380 = vmatpush1.bf16.msra.mxu0 0
        %381 = vmatprep.subr.bf16.mxu0 0
        %382 = vmatpush1.bf16.msra.mxu0 0
        %383 = vmatprep.subr.bf16.mxu0 0
        %384 = vmatpush1.bf16.msra.mxu0 0
        %385 = vmatprep.subr.bf16.mxu0 0
        %386 = vmatpush1.bf16.msra.mxu0 0
        %387 = vmatprep.subr.bf16.mxu0 0
        %388 = vmatpush1.bf16.msra.mxu0 0
        %389 = vmatprep.subr.bf16.mxu0 0
        %390 = vmatpush1.bf16.msra.mxu0 0
        %391 = vmatprep.subr.bf16.mxu0 0
        %392 = vmatpush1.bf16.msra.mxu0 0
        %393 = vmatprep.subr.bf16.mxu0 0
        %394 = vmatpush1.bf16.msra.mxu0 0
        %395 = vmatprep.subr.bf16.mxu0 0
        %396 = vmatpush1.bf16.msra.mxu0 0
        %397 = vmatprep.subr.bf16.mxu0 0
        %398 = vmatpush1.bf16.msra.mxu0 0
        %399 = vmatprep.subr.bf16.mxu0 0
        %400 = vmatpush1.bf16.msra.mxu0 0
        %401 = vmatprep.subr.bf16.mxu0 0
        %402 = vmatpush1.bf16.msra.mxu0 0
        %403 = vmatprep.subr.bf16.mxu0 0
        %404 = vmatpush1.bf16.msra.mxu0 0
        %405 = vmatprep.subr.bf16.mxu0 0
        %406 = vmatpush1.bf16.msra.mxu0 0
        %407 = vmatprep.subr.bf16.mxu0 0
        %408 = vmatpush1.bf16.msra.mxu0 0
        %409 = vmatprep.mubr.bf16.mxu0 0
        %410 = vmatmul.mubr.bf16.gmra.mrb[0].mxu0 %v375
        %v411 = vpop.f32.mrb[0].mxu0
        %v412 = vadd.f32 0.0, %v411
        %v413 = vpop.f32.mrb[0].mxu0
        %v414 = vpop.f32.mrb[0].mxu0
        %v415 = vadd.f32 0.0, %v414
        %v416 = vpop.f32.mrb[0].mxu0
        %417 = vdwg.mxu0
        %v418 = vpack.c.bf16 %v415, %v412
        %v419 = vld [vmem:[%s2] sm:$0xff]
        %v420 = vld [vmem:[%s2 + $0x8] sm:$0xff]
        %v421 = vld [vmem:[%s2 + $0x10] sm:$0xff]
        %v422 = vld [vmem:[%s2 + $0x18] sm:$0xff]
        %v423 = vld [vmem:[%s2 + $0x20] sm:$0xff]
        %v424 = vld [vmem:[%s2 + $0x28] sm:$0xff]
        %v425 = vld [vmem:[%s2 + $0x30] sm:$0xff]
        %v426 = vld [vmem:[%s2 + $0x38] sm:$0xff]
        %v427 = vld [vmem:[%s1 + $0x8] sm:$0xf]
        %v428 = vld [vmem:[%s1 + $0xc] sm:$0xf]
        %v431 = vunpack.c.l.b16 %v427
        %v432 = vunpack.c.l.b16 %v428
        %v433 = vpack.c.b16 %v432, %v431
        %v435 = vsel %vm373, %v433, 0
        %437 = vmatprep.subr.bf16.mxu0 0
        %438 = vmatpush1.bf16.msra.mxu0 %v371
        %439 = vmatprep.subr.bf16.mxu0 0
        %440 = vmatpush1.bf16.msra.mxu0 0
        %441 = vmatprep.subr.bf16.mxu0 0
        %442 = vmatpush1.bf16.msra.mxu0 0
        %443 = vmatprep.subr.bf16.mxu0 0
        %444 = vmatpush1.bf16.msra.mxu0 0
        %445 = vmatprep.subr.bf16.mxu0 0
        %446 = vmatpush1.bf16.msra.mxu0 0
        %447 = vmatprep.subr.bf16.mxu0 0
        %448 = vmatpush1.bf16.msra.mxu0 0
        %449 = vmatprep.subr.bf16.mxu0 0
        %450 = vmatpush1.bf16.msra.mxu0 0
        %451 = vmatprep.subr.bf16.mxu0 0
        %452 = vmatpush1.bf16.msra.mxu0 0
        %453 = vmatprep.subr.bf16.mxu0 0
        %454 = vmatpush1.bf16.msra.mxu0 0
        %455 = vmatprep.subr.bf16.mxu0 0
        %456 = vmatpush1.bf16.msra.mxu0 0
        %457 = vmatprep.subr.bf16.mxu0 0
        %458 = vmatpush1.bf16.msra.mxu0 0
        %459 = vmatprep.subr.bf16.mxu0 0
        %460 = vmatpush1.bf16.msra.mxu0 0
        %461 = vmatprep.subr.bf16.mxu0 0
        %462 = vmatpush1.bf16.msra.mxu0 0
        %463 = vmatprep.subr.bf16.mxu0 0
        %464 = vmatpush1.bf16.msra.mxu0 0
        %465 = vmatprep.subr.bf16.mxu0 0
        %466 = vmatpush1.bf16.msra.mxu0 0
        %467 = vmatprep.subr.bf16.mxu0 0
        %468 = vmatpush1.bf16.msra.mxu0 0
        %469 = vmatprep.mubr.bf16.mxu0 0
        %470 = vmatmul.mubr.bf16.gmra.mrb[0].mxu0 %v435
        %v471 = vpop.f32.mrb[0].mxu0
        %v472 = vadd.f32 0.0, %v471
        %v473 = vpop.f32.mrb[0].mxu0
        %v474 = vpop.f32.mrb[0].mxu0
        %v475 = vadd.f32 0.0, %v474
        %v476 = vpop.f32.mrb[0].mxu0
        %477 = vdwg.mxu0
        %v478 = vpack.c.bf16 %v475, %v472
        %v479 = vld [vmem:[%s2 + $0x40] sm:$0xff]
        %v480 = vld [vmem:[%s2 + $0x48] sm:$0xff]
        %v481 = vld [vmem:[%s2 + $0x50] sm:$0xff]
        %v482 = vld [vmem:[%s2 + $0x58] sm:$0xff]
        %v483 = vld [vmem:[%s2 + $0x60] sm:$0xff]
        %v484 = vld [vmem:[%s2 + $0x68] sm:$0xff]
        %v485 = vld [vmem:[%s2 + $0x70] sm:$0xff]
        %v486 = vld [vmem:[%s2 + $0x78] sm:$0xff]
        %v495 = vunpack.c.l.b16 %v479
        %v496 = vunpack.c.h.b16 %v479
        %v497 = vunpack.c.l.b16 %v480
        %v498 = vunpack.c.h.b16 %v480
        %v499 = vunpack.c.l.b16 %v481
        %v500 = vunpack.c.h.b16 %v481
        %v501 = vunpack.c.l.b16 %v482
        %v502 = vunpack.c.h.b16 %v482
        %v503 = vunpack.c.l.b16 %v483
        %v504 = vunpack.c.h.b16 %v483
        %v505 = vunpack.c.l.b16 %v484
        %v506 = vunpack.c.h.b16 %v484
        %v507 = vunpack.c.l.b16 %v485
        %v508 = vunpack.c.h.b16 %v485
        %v509 = vunpack.c.l.b16 %v486
        %v510 = vunpack.c.h.b16 %v486
        %v511 = vpack.c.b16 %v497, %v495
        %v512 = vpack.c.b16 %v498, %v496
        %v513 = vpack.c.b16 %v501, %v499
        %v514 = vpack.c.b16 %v502, %v500
        %v515 = vpack.c.b16 %v505, %v503
        %v516 = vpack.c.b16 %v506, %v504
        %v517 = vpack.c.b16 %v509, %v507
        %v518 = vpack.c.b16 %v510, %v508
        %vm527 = vcmask 523264
        %v529 = vsel %vm527, %v478, 0
        %531 = vmatprep.subr.bf16.mxu0 %v512
        %532 = vmatpush1.bf16.msra.mxu0 %v511
        %533 = vmatprep.subr.bf16.mxu0 %v514
        %534 = vmatpush1.bf16.msra.mxu0 %v513
        %535 = vmatprep.subr.bf16.mxu0 %v516
        %536 = vmatpush1.bf16.msra.mxu0 %v515
        %537 = vmatprep.subr.bf16.mxu0 %v518
        %538 = vmatpush1.bf16.msra.mxu0 %v517
        %539 = vmatprep.subr.bf16.mxu0 0
        %540 = vmatpush1.bf16.msra.mxu0 0
        %541 = vmatprep.subr.bf16.mxu0 0
        %542 = vmatpush1.bf16.msra.mxu0 0
        %543 = vmatprep.subr.bf16.mxu0 0
        %544 = vmatpush1.bf16.msra.mxu0 0
        %545 = vmatprep.subr.bf16.mxu0 0
        %546 = vmatpush1.bf16.msra.mxu0 0
        %547 = vmatprep.subr.bf16.mxu0 0
        %548 = vmatpush1.bf16.msra.mxu0 0
        %549 = vmatprep.subr.bf16.mxu0 0
        %550 = vmatpush1.bf16.msra.mxu0 0
        %551 = vmatprep.subr.bf16.mxu0 0
        %552 = vmatpush1.bf16.msra.mxu0 0
        %553 = vmatprep.subr.bf16.mxu0 0
        %554 = vmatpush1.bf16.msra.mxu0 0
        %555 = vmatprep.subr.bf16.mxu0 0
        %556 = vmatpush1.bf16.msra.mxu0 0
        %557 = vmatprep.subr.bf16.mxu0 0
        %558 = vmatpush1.bf16.msra.mxu0 0
        %559 = vmatprep.subr.bf16.mxu0 0
        %560 = vmatpush1.bf16.msra.mxu0 0
        %561 = vmatprep.subr.bf16.mxu0 0
        %562 = vmatpush1.bf16.msra.mxu0 0
        %563 = vmatprep.mubr.bf16.mxu0 0
        %564 = vmatmul.mubr.bf16.gmra.mrb[0].mxu0 %v529
        %v565 = vpop.f32.mrb[0].mxu0
        %v566 = vadd.f32 0.0, %v565
        %v567 = vpop.f32.mrb[0].mxu0
        %v568 = vadd.f32 0.0, %v567
        %v569 = vpop.f32.mrb[0].mxu0
        %v570 = vadd.f32 0.0, %v569
        %v571 = vpop.f32.mrb[0].mxu0
        %v572 = vadd.f32 0.0, %v571
        %573 = vdwg.mxu0
        %v582 = vunpack.c.l.b16 %v419
        %v583 = vunpack.c.h.b16 %v419
        %v584 = vunpack.c.l.b16 %v420
        %v585 = vunpack.c.h.b16 %v420
        %v586 = vunpack.c.l.b16 %v421
        %v587 = vunpack.c.h.b16 %v421
        %v588 = vunpack.c.l.b16 %v422
        %v589 = vunpack.c.h.b16 %v422
        %v590 = vunpack.c.l.b16 %v423
        %v591 = vunpack.c.h.b16 %v423
        %v592 = vunpack.c.l.b16 %v424
        %v593 = vunpack.c.h.b16 %v424
        %v594 = vunpack.c.l.b16 %v425
        %v595 = vunpack.c.h.b16 %v425
        %v596 = vunpack.c.l.b16 %v426
        %v597 = vunpack.c.h.b16 %v426
        %v598 = vpack.c.b16 %v584, %v582
        %v599 = vpack.c.b16 %v585, %v583
        %v600 = vpack.c.b16 %v588, %v586
        %v601 = vpack.c.b16 %v589, %v587
        %v602 = vpack.c.b16 %v592, %v590
        %v603 = vpack.c.b16 %v593, %v591
        %v604 = vpack.c.b16 %v596, %v594
        %v605 = vpack.c.b16 %v597, %v595
        %v615 = vsel %vm527, %v418, 0
        %617 = vmatprep.subr.bf16.mxu0 %v599
        %618 = vmatpush1.bf16.msra.mxu0 %v598
        %619 = vmatprep.subr.bf16.mxu0 %v601
        %620 = vmatpush1.bf16.msra.mxu0 %v600
        %621 = vmatprep.subr.bf16.mxu0 %v603
        %622 = vmatpush1.bf16.msra.mxu0 %v602
        %623 = vmatprep.subr.bf16.mxu0 %v605
        %624 = vmatpush1.bf16.msra.mxu0 %v604
        %625 = vmatprep.subr.bf16.mxu0 0
        %626 = vmatpush1.bf16.msra.mxu0 0
        %627 = vmatprep.subr.bf16.mxu0 0
        %628 = vmatpush1.bf16.msra.mxu0 0
        %629 = vmatprep.subr.bf16.mxu0 0
        %630 = vmatpush1.bf16.msra.mxu0 0
        %631 = vmatprep.subr.bf16.mxu0 0
        %632 = vmatpush1.bf16.msra.mxu0 0
        %633 = vmatprep.subr.bf16.mxu0 0
        %634 = vmatpush1.bf16.msra.mxu0 0
        %635 = vmatprep.subr.bf16.mxu0 0
        %636 = vmatpush1.bf16.msra.mxu0 0
        %637 = vmatprep.subr.bf16.mxu0 0
        %638 = vmatpush1.bf16.msra.mxu0 0
        %639 = vmatprep.subr.bf16.mxu0 0
        %640 = vmatpush1.bf16.msra.mxu0 0
        %641 = vmatprep.subr.bf16.mxu0 0
        %642 = vmatpush1.bf16.msra.mxu0 0
        %643 = vmatprep.subr.bf16.mxu0 0
        %644 = vmatpush1.bf16.msra.mxu0 0
        %645 = vmatprep.subr.bf16.mxu0 0
        %646 = vmatpush1.bf16.msra.mxu0 0
        %647 = vmatprep.subr.bf16.mxu0 0
        %648 = vmatpush1.bf16.msra.mxu0 0
        %649 = vmatprep.mubr.bf16.mxu0 0
        %650 = vmatmul.mubr.bf16.gmra.mrb[0].mxu0 %v615
        %v651 = vpop.f32.mrb[0].mxu0
        %v652 = vadd.f32 %v566, %v651
        %v653 = vpop.f32.mrb[0].mxu0
        %v654 = vadd.f32 %v568, %v653
        %v655 = vpop.f32.mrb[0].mxu0
        %v656 = vadd.f32 %v570, %v655
        %v657 = vpop.f32.mrb[0].mxu0
        %v658 = vadd.f32 %v572, %v657
        %659 = vdwg.mxu0
        %v660 = vld [vmem:[%s1 + $0x10] sm:$0xf]
        %v661 = vld [vmem:[%s1 + $0x14] sm:$0xf]
        %v664 = vunpack.c.l.b16 %v660
        %v665 = vunpack.c.l.b16 %v661
        %v666 = vpack.c.b16 %v665, %v664
        %v668 = vsel %vm373, %v666, 0
        %670 = vmatprep.subr.bf16.mxu0 0
        %671 = vmatpush1.bf16.msra.mxu0 %v371
        %672 = vmatprep.subr.bf16.mxu0 0
        %673 = vmatpush1.bf16.msra.mxu0 0
        %674 = vmatprep.subr.bf16.mxu0 0
        %675 = vmatpush1.bf16.msra.mxu0 0
        %676 = vmatprep.subr.bf16.mxu0 0
        %677 = vmatpush1.bf16.msra.mxu0 0
        %678 = vmatprep.subr.bf16.mxu0 0
        %679 = vmatpush1.bf16.msra.mxu0 0
        %680 = vmatprep.subr.bf16.mxu0 0
        %681 = vmatpush1.bf16.msra.mxu0 0
        %682 = vmatprep.subr.bf16.mxu0 0
        %683 = vmatpush1.bf16.msra.mxu0 0
        %684 = vmatprep.subr.bf16.mxu0 0
        %685 = vmatpush1.bf16.msra.mxu0 0
        %686 = vmatprep.subr.bf16.mxu0 0
        %687 = vmatpush1.bf16.msra.mxu0 0
        %688 = vmatprep.subr.bf16.mxu0 0
        %689 = vmatpush1.bf16.msra.mxu0 0
        %690 = vmatprep.subr.bf16.mxu0 0
        %691 = vmatpush1.bf16.msra.mxu0 0
        %692 = vmatprep.subr.bf16.mxu0 0
        %693 = vmatpush1.bf16.msra.mxu0 0
        %694 = vmatprep.subr.bf16.mxu0 0
        %695 = vmatpush1.bf16.msra.mxu0 0
        %696 = vmatprep.subr.bf16.mxu0 0
        %697 = vmatpush1.bf16.msra.mxu0 0
        %698 = vmatprep.subr.bf16.mxu0 0
        %699 = vmatpush1.bf16.msra.mxu0 0
        %700 = vmatprep.subr.bf16.mxu0 0
        %701 = vmatpush1.bf16.msra.mxu0 0
        %702 = vmatprep.mubr.bf16.mxu0 0
        %703 = vmatmul.mubr.bf16.gmra.mrb[0].mxu0 %v668
        %v704 = vpop.f32.mrb[0].mxu0
        %v705 = vadd.f32 0.0, %v704
        %v706 = vpop.f32.mrb[0].mxu0
        %v707 = vpop.f32.mrb[0].mxu0
        %v708 = vadd.f32 0.0, %v707
        %v709 = vpop.f32.mrb[0].mxu0
        %710 = vdwg.mxu0
        %v711 = vpack.c.bf16 %v708, %v705
        %v712 = vld [vmem:[%s2 + $0x80] sm:$0xff]
        %v713 = vld [vmem:[%s2 + $0x88] sm:$0xff]
        %v714 = vld [vmem:[%s2 + $0x90] sm:$0xff]
        %v715 = vld [vmem:[%s2 + $0x98] sm:$0xff]
        %v716 = vld [vmem:[%s2 + $0xa0] sm:$0xff]
        %v717 = vld [vmem:[%s2 + $0xa8] sm:$0xff]
        %v718 = vld [vmem:[%s2 + $0xb0] sm:$0xff]
        %v719 = vld [vmem:[%s2 + $0xb8] sm:$0xff]
        %v728 = vunpack.c.l.b16 %v712
        %v729 = vunpack.c.h.b16 %v712
        %v730 = vunpack.c.l.b16 %v713
        %v731 = vunpack.c.h.b16 %v713
        %v732 = vunpack.c.l.b16 %v714
        %v733 = vunpack.c.h.b16 %v714
        %v734 = vunpack.c.l.b16 %v715
        %v735 = vunpack.c.h.b16 %v715
        %v736 = vunpack.c.l.b16 %v716
        %v737 = vunpack.c.h.b16 %v716
        %v738 = vunpack.c.l.b16 %v717
        %v739 = vunpack.c.h.b16 %v717
        %v740 = vunpack.c.l.b16 %v718
        %v741 = vunpack.c.h.b16 %v718
        %v742 = vunpack.c.l.b16 %v719
        %v743 = vunpack.c.h.b16 %v719
        %v744 = vpack.c.b16 %v730, %v728
        %v745 = vpack.c.b16 %v731, %v729
        %v746 = vpack.c.b16 %v734, %v732
        %v747 = vpack.c.b16 %v735, %v733
        %v748 = vpack.c.b16 %v738, %v736
        %v749 = vpack.c.b16 %v739, %v737
        %v750 = vpack.c.b16 %v742, %v740
        %v751 = vpack.c.b16 %v743, %v741
        %v761 = vsel %vm527, %v711, 0
        %763 = vmatprep.subr.bf16.mxu0 %v745
        %764 = vmatpush1.bf16.msra.mxu0 %v744
        %765 = vmatprep.subr.bf16.mxu0 %v747
        %766 = vmatpush1.bf16.msra.mxu0 %v746
        %767 = vmatprep.subr.bf16.mxu0 %v749
        %768 = vmatpush1.bf16.msra.mxu0 %v748
        %769 = vmatprep.subr.bf16.mxu0 %v751
        %770 = vmatpush1.bf16.msra.mxu0 %v750
        %771 = vmatprep.subr.bf16.mxu0 0
        %772 = vmatpush1.bf16.msra.mxu0 0
        %773 = vmatprep.subr.bf16.mxu0 0
        %774 = vmatpush1.bf16.msra.mxu0 0
        %775 = vmatprep.subr.bf16.mxu0 0
        %776 = vmatpush1.bf16.msra.mxu0 0
        %777 = vmatprep.subr.bf16.mxu0 0
        %778 = vmatpush1.bf16.msra.mxu0 0
        %779 = vmatprep.subr.bf16.mxu0 0
        %780 = vmatpush1.bf16.msra.mxu0 0
        %781 = vmatprep.subr.bf16.mxu0 0
        %782 = vmatpush1.bf16.msra.mxu0 0
        %783 = vmatprep.subr.bf16.mxu0 0
        %784 = vmatpush1.bf16.msra.mxu0 0
        %785 = vmatprep.subr.bf16.mxu0 0
        %786 = vmatpush1.bf16.msra.mxu0 0
        %787 = vmatprep.subr.bf16.mxu0 0
        %788 = vmatpush1.bf16.msra.mxu0 0
        %789 = vmatprep.subr.bf16.mxu0 0
        %790 = vmatpush1.bf16.msra.mxu0 0
        %791 = vmatprep.subr.bf16.mxu0 0
        %792 = vmatpush1.bf16.msra.mxu0 0
        %793 = vmatprep.subr.bf16.mxu0 0
        %794 = vmatpush1.bf16.msra.mxu0 0
        %795 = vmatprep.mubr.bf16.mxu0 0
        %796 = vmatmul.mubr.bf16.gmra.mrb[0].mxu0 %v761
        %v797 = vpop.f32.mrb[0].mxu0
        %v798 = vadd.f32 0.0, %v797
        %v799 = vpop.f32.mrb[0].mxu0
        %v800 = vadd.f32 0.0, %v799
        %v801 = vpop.f32.mrb[0].mxu0
        %v802 = vadd.f32 0.0, %v801
        %v803 = vpop.f32.mrb[0].mxu0
        %v804 = vadd.f32 0.0, %v803
        %805 = vdwg.mxu0
        %v806 = vadd.f32 %v652, %v798
        %v807 = vadd.f32 %v654, %v800
        %v808 = vadd.f32 %v656, %v802
        %v809 = vadd.f32 %v658, %v804
        %v810 = vld [vmem:[%s3] sm:$0x3]
        %v812 = vlaneseq
        %v813 = vshrl.u32 %v812, 7
        %v814 = vsub.s32 0, %v813
        %v815 = vrot.slane %v810, %v814
        %v816 = vlaneseq
        %v817 = vshrl.u32 %v816, 7
        %v818 = vsub.s32 1, %v817
        %v819 = vrot.slane %v810, %v818
        %v822 = vadd.f32 %v806, %v815
        %v823 = vadd.f32 %v807, %v819
        %v824 = vadd.f32 %v808, %v815
        %v825 = vadd.f32 %v809, %v819
        %v826 = vmax.f32 %v822, 0.0
        %v827 = vmax.f32 %v823, 0.0
        %v828 = vmax.f32 %v824, 0.0
        %v829 = vmax.f32 %v825, 0.0
        %v830 = vpack.c.bf16 %v828, %v826
        %v831 = vpack.c.bf16 %v829, %v827
        %v832 = vld [vmem:[%s4] sm:$0xf]
        %v834 = vsel %vm373, %v832, 0
        %836 = vmatprep.subr.bf16.mxu0 %v831
        %837 = vmatpush1.bf16.msra.mxu0 %v830
        %838 = vmatprep.subr.bf16.mxu0 0
        %839 = vmatpush1.bf16.msra.mxu0 0
        %840 = vmatprep.subr.bf16.mxu0 0
        %841 = vmatpush1.bf16.msra.mxu0 0
        %842 = vmatprep.subr.bf16.mxu0 0
        %843 = vmatpush1.bf16.msra.mxu0 0
        %844 = vmatprep.subr.bf16.mxu0 0
        %845 = vmatpush1.bf16.msra.mxu0 0
        %846 = vmatprep.subr.bf16.mxu0 0
        %847 = vmatpush1.bf16.msra.mxu0 0
        %848 = vmatprep.subr.bf16.mxu0 0
        %849 = vmatpush1.bf16.msra.mxu0 0
        %850 = vmatprep.subr.bf16.mxu0 0
        %851 = vmatpush1.bf16.msra.mxu0 0
        %852 = vmatprep.subr.bf16.mxu0 0
        %853 = vmatpush1.bf16.msra.mxu0 0
        %854 = vmatprep.subr.bf16.mxu0 0
        %855 = vmatpush1.bf16.msra.mxu0 0
        %856 = vmatprep.subr.bf16.mxu0 0
        %857 = vmatpush1.bf16.msra.mxu0 0
        %858 = vmatprep.subr.bf16.mxu0 0
        %859 = vmatpush1.bf16.msra.mxu0 0
        %860 = vmatprep.subr.bf16.mxu0 0
        %861 = vmatpush1.bf16.msra.mxu0 0
        %862 = vmatprep.subr.bf16.mxu0 0
        %863 = vmatpush1.bf16.msra.mxu0 0
        %864 = vmatprep.subr.bf16.mxu0 0
        %865 = vmatpush1.bf16.msra.mxu0 0
        %866 = vmatprep.subr.bf16.mxu0 0
        %867 = vmatpush1.bf16.msra.mxu0 0
        %868 = vmatprep.mubr.bf16.mxu0 0
        %869 = vmatmul.mubr.bf16.gmra.mrb[0].mxu0 %v834
        %v870 = vpop.f32.mrb[0].mxu0
        %v871 = vadd.f32 0.0, %v870
        %v872 = vpop.f32.mrb[0].mxu0
        %v873 = vadd.f32 0.0, %v872
        %v874 = vpop.f32.mrb[0].mxu0
        %v875 = vpop.f32.mrb[0].mxu0
        %876 = vdwg.mxu0
        %v877 = vpack.c.bf16 %v871, %v871
        %v878 = vpack.c.bf16 %v873, %v873
        %v879 = vld [vmem:[%s5] sm:$0xff]
        %v880 = vld [vmem:[%s5 + $0x8] sm:$0xff]
        %v881 = vld [vmem:[%s5 + $0x10] sm:$0xff]
        %v882 = vld [vmem:[%s5 + $0x18] sm:$0xff]
        %v883 = vld [vmem:[%s5 + $0x20] sm:$0xff]
        %v884 = vld [vmem:[%s5 + $0x28] sm:$0xff]
        %v885 = vld [vmem:[%s5 + $0x30] sm:$0xff]
        %v886 = vld [vmem:[%s5 + $0x38] sm:$0xff]
        %v887 = vld [vmem:[%s5 + $0x40] sm:$0xff]
        %v888 = vld [vmem:[%s5 + $0x48] sm:$0xff]
        %v889 = vld [vmem:[%s5 + $0x50] sm:$0xff]
        %v890 = vld [vmem:[%s5 + $0x58] sm:$0xff]
        %v891 = vld [vmem:[%s5 + $0x60] sm:$0xff]
        %v892 = vld [vmem:[%s5 + $0x68] sm:$0xff]
        %v893 = vld [vmem:[%s5 + $0x70] sm:$0xff]
        %v894 = vld [vmem:[%s5 + $0x78] sm:$0xff]
        %v895 = vld [vmem:[%s5 + $0x80] sm:$0xff]
        %v896 = vld [vmem:[%s5 + $0x88] sm:$0xff]
        %v897 = vld [vmem:[%s5 + $0x90] sm:$0xff]
        %v898 = vld [vmem:[%s5 + $0x98] sm:$0xff]
        %v899 = vld [vmem:[%s5 + $0xa0] sm:$0xff]
        %v900 = vld [vmem:[%s5 + $0xa8] sm:$0xff]
        %v901 = vld [vmem:[%s5 + $0xb0] sm:$0xff]
        %v902 = vld [vmem:[%s5 + $0xb8] sm:$0xff]
        %v903 = vld [vmem:[%s5 + $0xc0] sm:$0xff]
        %v904 = vld [vmem:[%s5 + $0xc8] sm:$0xff]
        %v905 = vld [vmem:[%s5 + $0xd0] sm:$0xff]
        %v906 = vld [vmem:[%s5 + $0xd8] sm:$0xff]
        %v907 = vld [vmem:[%s5 + $0xe0] sm:$0xff]
        %v908 = vld [vmem:[%s5 + $0xe8] sm:$0xff]
        %v909 = vld [vmem:[%s5 + $0xf0] sm:$0xff]
        %v910 = vld [vmem:[%s5 + $0xf8] sm:$0xff]
        %v911 = vld [vmem:[%s4 + $0x4] sm:$0xf]
        %v913 = vsel %vm373, %v911, 0
        %915 = vmatprep.subr.bf16.mxu0 %v831
        %916 = vmatpush1.bf16.msra.mxu0 %v830
        %917 = vmatprep.subr.bf16.mxu0 0
        %918 = vmatpush1.bf16.msra.mxu0 0
        %919 = vmatprep.subr.bf16.mxu0 0
        %920 = vmatpush1.bf16.msra.mxu0 0
        %921 = vmatprep.subr.bf16.mxu0 0
        %922 = vmatpush1.bf16.msra.mxu0 0
        %923 = vmatprep.subr.bf16.mxu0 0
        %924 = vmatpush1.bf16.msra.mxu0 0
        %925 = vmatprep.subr.bf16.mxu0 0
        %926 = vmatpush1.bf16.msra.mxu0 0
        %927 = vmatprep.subr.bf16.mxu0 0
        %928 = vmatpush1.bf16.msra.mxu0 0
        %929 = vmatprep.subr.bf16.mxu0 0
        %930 = vmatpush1.bf16.msra.mxu0 0
        %931 = vmatprep.subr.bf16.mxu0 0
        %932 = vmatpush1.bf16.msra.mxu0 0
        %933 = vmatprep.subr.bf16.mxu0 0
        %934 = vmatpush1.bf16.msra.mxu0 0
        %935 = vmatprep.subr.bf16.mxu0 0
        %936 = vmatpush1.bf16.msra.mxu0 0
        %937 = vmatprep.subr.bf16.mxu0 0
        %938 = vmatpush1.bf16.msra.mxu0 0
        %939 = vmatprep.subr.bf16.mxu0 0
        %940 = vmatpush1.bf16.msra.mxu0 0
        %941 = vmatprep.subr.bf16.mxu0 0
        %942 = vmatpush1.bf16.msra.mxu0 0
        %943 = vmatprep.subr.bf16.mxu0 0
        %944 = vmatpush1.bf16.msra.mxu0 0
        %945 = vmatprep.subr.bf16.mxu0 0
        %946 = vmatpush1.bf16.msra.mxu0 0
        %947 = vmatprep.mubr.bf16.mxu0 0
        %948 = vmatmul.mubr.bf16.gmra.mrb[0].mxu0 %v913
        %v949 = vpop.f32.mrb[0].mxu0
        %v950 = vadd.f32 0.0, %v949
        %v951 = vpop.f32.mrb[0].mxu0
        %v952 = vadd.f32 0.0, %v951
        %v953 = vpop.f32.mrb[0].mxu0
        %v954 = vpop.f32.mrb[0].mxu0
        %955 = vdwg.mxu0
        %v956 = vpack.c.bf16 %v950, %v950
        %v957 = vpack.c.bf16 %v952, %v952
        %v958 = vld [vmem:[%s5 + $0x100] sm:$0xff]
        %v959 = vld [vmem:[%s5 + $0x108] sm:$0xff]
        %v960 = vld [vmem:[%s5 + $0x110] sm:$0xff]
        %v961 = vld [vmem:[%s5 + $0x118] sm:$0xff]
        %v962 = vld [vmem:[%s5 + $0x120] sm:$0xff]
        %v963 = vld [vmem:[%s5 + $0x128] sm:$0xff]
        %v964 = vld [vmem:[%s5 + $0x130] sm:$0xff]
        %v965 = vld [vmem:[%s5 + $0x138] sm:$0xff]
        %v966 = vld [vmem:[%s5 + $0x140] sm:$0xff]
        %v967 = vld [vmem:[%s5 + $0x148] sm:$0xff]
        %v968 = vld [vmem:[%s5 + $0x150] sm:$0xff]
        %v969 = vld [vmem:[%s5 + $0x158] sm:$0xff]
        %v970 = vld [vmem:[%s5 + $0x160] sm:$0xff]
        %v971 = vld [vmem:[%s5 + $0x168] sm:$0xff]
        %v972 = vld [vmem:[%s5 + $0x170] sm:$0xff]
        %v973 = vld [vmem:[%s5 + $0x178] sm:$0xff]
        %v974 = vld [vmem:[%s5 + $0x180] sm:$0xff]
        %v975 = vld [vmem:[%s5 + $0x188] sm:$0xff]
        %v976 = vld [vmem:[%s5 + $0x190] sm:$0xff]
        %v977 = vld [vmem:[%s5 + $0x198] sm:$0xff]
        %v978 = vld [vmem:[%s5 + $0x1a0] sm:$0xff]
        %v979 = vld [vmem:[%s5 + $0x1a8] sm:$0xff]
        %v980 = vld [vmem:[%s5 + $0x1b0] sm:$0xff]
        %v981 = vld [vmem:[%s5 + $0x1b8] sm:$0xff]
        %v982 = vld [vmem:[%s5 + $0x1c0] sm:$0xff]
        %v983 = vld [vmem:[%s5 + $0x1c8] sm:$0xff]
        %v984 = vld [vmem:[%s5 + $0x1d0] sm:$0xff]
        %v985 = vld [vmem:[%s5 + $0x1d8] sm:$0xff]
        %v986 = vld [vmem:[%s5 + $0x1e0] sm:$0xff]
        %v987 = vld [vmem:[%s5 + $0x1e8] sm:$0xff]
        %v988 = vld [vmem:[%s5 + $0x1f0] sm:$0xff]
        %v989 = vld [vmem:[%s5 + $0x1f8] sm:$0xff]
        %v1022 = vunpack.c.l.b16 %v958
        %v1023 = vunpack.c.h.b16 %v958
        %v1024 = vunpack.c.l.b16 %v959
        %v1025 = vunpack.c.h.b16 %v959
        %v1026 = vunpack.c.l.b16 %v960
        %v1027 = vunpack.c.h.b16 %v960
        %v1028 = vunpack.c.l.b16 %v961
        %v1029 = vunpack.c.h.b16 %v961
        %v1030 = vunpack.c.l.b16 %v962
        %v1031 = vunpack.c.h.b16 %v962
        %v1032 = vunpack.c.l.b16 %v963
        %v1033 = vunpack.c.h.b16 %v963
        %v1034 = vunpack.c.l.b16 %v964
        %v1035 = vunpack.c.h.b16 %v964
        %v1036 = vunpack.c.l.b16 %v965
        %v1037 = vunpack.c.h.b16 %v965
        %v1038 = vunpack.c.l.b16 %v966
        %v1039 = vunpack.c.h.b16 %v966
        %v1040 = vunpack.c.l.b16 %v967
        %v1041 = vunpack.c.h.b16 %v967
        %v1042 = vunpack.c.l.b16 %v968
        %v1043 = vunpack.c.h.b16 %v968
        %v1044 = vunpack.c.l.b16 %v969
        %v1045 = vunpack.c.h.b16 %v969
        %v1046 = vunpack.c.l.b16 %v970
        %v1047 = vunpack.c.h.b16 %v970
        %v1048 = vunpack.c.l.b16 %v971
        %v1049 = vunpack.c.h.b16 %v971
        %v1050 = vunpack.c.l.b16 %v972
        %v1051 = vunpack.c.h.b16 %v972
        %v1052 = vunpack.c.l.b16 %v973
        %v1053 = vunpack.c.h.b16 %v973
        %v1054 = vunpack.c.l.b16 %v974
        %v1055 = vunpack.c.h.b16 %v974
        %v1056 = vunpack.c.l.b16 %v975
        %v1057 = vunpack.c.h.b16 %v975
        %v1058 = vunpack.c.l.b16 %v976
        %v1059 = vunpack.c.h.b16 %v976
        %v1060 = vunpack.c.l.b16 %v977
        %v1061 = vunpack.c.h.b16 %v977
        %v1062 = vunpack.c.l.b16 %v978
        %v1063 = vunpack.c.h.b16 %v978
        %v1064 = vunpack.c.l.b16 %v979
        %v1065 = vunpack.c.h.b16 %v979
        %v1066 = vunpack.c.l.b16 %v980
        %v1067 = vunpack.c.h.b16 %v980
        %v1068 = vunpack.c.l.b16 %v981
        %v1069 = vunpack.c.h.b16 %v981
        %v1070 = vunpack.c.l.b16 %v982
        %v1071 = vunpack.c.h.b16 %v982
        %v1072 = vunpack.c.l.b16 %v983
        %v1073 = vunpack.c.h.b16 %v983
        %v1074 = vunpack.c.l.b16 %v984
        %v1075 = vunpack.c.h.b16 %v984
        %v1076 = vunpack.c.l.b16 %v985
        %v1077 = vunpack.c.h.b16 %v985
        %v1078 = vunpack.c.l.b16 %v986
        %v1079 = vunpack.c.h.b16 %v986
        %v1080 = vunpack.c.l.b16 %v987
        %v1081 = vunpack.c.h.b16 %v987
        %v1082 = vunpack.c.l.b16 %v988
        %v1083 = vunpack.c.h.b16 %v988
        %v1084 = vunpack.c.l.b16 %v989
        %v1085 = vunpack.c.h.b16 %v989
        %v1086 = vpack.c.b16 %v1024, %v1022
        %v1087 = vpack.c.b16 %v1025, %v1023
        %v1088 = vpack.c.b16 %v1028, %v1026
        %v1089 = vpack.c.b16 %v1029, %v1027
        %v1090 = vpack.c.b16 %v1032, %v1030
        %v1091 = vpack.c.b16 %v1033, %v1031
        %v1092 = vpack.c.b16 %v1036, %v1034
        %v1093 = vpack.c.b16 %v1037, %v1035
        %v1094 = vpack.c.b16 %v1040, %v1038
        %v1095 = vpack.c.b16 %v1041, %v1039
        %v1096 = vpack.c.b16 %v1044, %v1042
        %v1097 = vpack.c.b16 %v1045, %v1043
        %v1098 = vpack.c.b16 %v1048, %v1046
        %v1099 = vpack.c.b16 %v1049, %v1047
        %v1100 = vpack.c.b16 %v1052, %v1050
        %v1101 = vpack.c.b16 %v1053, %v1051
        %v1102 = vpack.c.b16 %v1056, %v1054
        %v1103 = vpack.c.b16 %v1057, %v1055
        %v1104 = vpack.c.b16 %v1060, %v1058
        %v1105 = vpack.c.b16 %v1061, %v1059
        %v1106 = vpack.c.b16 %v1064, %v1062
        %v1107 = vpack.c.b16 %v1065, %v1063
        %v1108 = vpack.c.b16 %v1068, %v1066
        %v1109 = vpack.c.b16 %v1069, %v1067
        %v1110 = vpack.c.b16 %v1072, %v1070
        %v1111 = vpack.c.b16 %v1073, %v1071
        %v1112 = vpack.c.b16 %v1076, %v1074
        %v1113 = vpack.c.b16 %v1077, %v1075
        %v1114 = vpack.c.b16 %v1080, %v1078
        %v1115 = vpack.c.b16 %v1081, %v1079
        %v1116 = vpack.c.b16 %v1084, %v1082
        %v1117 = vpack.c.b16 %v1085, %v1083
        %1150 = vmatprep.subr.bf16.mxu0 %v1087
        %1151 = vmatpush1.bf16.msra.mxu0 %v1086
        %1152 = vmatprep.subr.bf16.mxu0 %v1089
        %1153 = vmatpush1.bf16.msra.mxu0 %v1088
        %1154 = vmatprep.subr.bf16.mxu0 %v1091
        %1155 = vmatpush1.bf16.msra.mxu0 %v1090
        %1156 = vmatprep.subr.bf16.mxu0 %v1093
        %1157 = vmatpush1.bf16.msra.mxu0 %v1092
        %1158 = vmatprep.subr.bf16.mxu0 %v1095
        %1159 = vmatpush1.bf16.msra.mxu0 %v1094
        %1160 = vmatprep.subr.bf16.mxu0 %v1097
        %1161 = vmatpush1.bf16.msra.mxu0 %v1096
        %1162 = vmatprep.subr.bf16.mxu0 %v1099
        %1163 = vmatpush1.bf16.msra.mxu0 %v1098
        %1164 = vmatprep.subr.bf16.mxu0 %v1101
        %1165 = vmatpush1.bf16.msra.mxu0 %v1100
        %1166 = vmatprep.subr.bf16.mxu0 %v1103
        %1167 = vmatpush1.bf16.msra.mxu0 %v1102
        %1168 = vmatprep.subr.bf16.mxu0 %v1105
        %1169 = vmatpush1.bf16.msra.mxu0 %v1104
        %1170 = vmatprep.subr.bf16.mxu0 %v1107
        %1171 = vmatpush1.bf16.msra.mxu0 %v1106
        %1172 = vmatprep.subr.bf16.mxu0 %v1109
        %1173 = vmatpush1.bf16.msra.mxu0 %v1108
        %1174 = vmatprep.subr.bf16.mxu0 %v1111
        %1175 = vmatpush1.bf16.msra.mxu0 %v1110
        %1176 = vmatprep.subr.bf16.mxu0 %v1113
        %1177 = vmatpush1.bf16.msra.mxu0 %v1112
        %1178 = vmatprep.subr.bf16.mxu0 %v1115
        %1179 = vmatpush1.bf16.msra.mxu0 %v1114
        %1180 = vmatprep.subr.bf16.mxu0 %v1117
        %1181 = vmatpush1.bf16.msra.mxu0 %v1116
        %1182 = vmatprep.mubr.bf16.mxu0 %v957
        %1183 = vmatmul.mubr.bf16.gmra.mrb[0].mxu0 %v956
        %v1184 = vpop.f32.mrb[0].mxu0
        %v1185 = vadd.f32 0.0, %v1184
        %v1186 = vpop.f32.mrb[0].mxu0
        %v1187 = vadd.f32 0.0, %v1186
        %v1188 = vpop.f32.mrb[0].mxu0
        %v1189 = vpop.f32.mrb[0].mxu0
        %1190 = vdwg.mxu0
        %v1223 = vunpack.c.l.b16 %v879
        %v1224 = vunpack.c.h.b16 %v879
        %v1225 = vunpack.c.l.b16 %v880
        %v1226 = vunpack.c.h.b16 %v880
        %v1227 = vunpack.c.l.b16 %v881
        %v1228 = vunpack.c.h.b16 %v881
        %v1229 = vunpack.c.l.b16 %v882
        %v1230 = vunpack.c.h.b16 %v882
        %v1231 = vunpack.c.l.b16 %v883
        %v1232 = vunpack.c.h.b16 %v883
        %v1233 = vunpack.c.l.b16 %v884
        %v1234 = vunpack.c.h.b16 %v884
        %v1235 = vunpack.c.l.b16 %v885
        %v1236 = vunpack.c.h.b16 %v885
        %v1237 = vunpack.c.l.b16 %v886
        %v1238 = vunpack.c.h.b16 %v886
        %v1239 = vunpack.c.l.b16 %v887
        %v1240 = vunpack.c.h.b16 %v887
        %v1241 = vunpack.c.l.b16 %v888
        %v1242 = vunpack.c.h.b16 %v888
        %v1243 = vunpack.c.l.b16 %v889
        %v1244 = vunpack.c.h.b16 %v889
        %v1245 = vunpack.c.l.b16 %v890
        %v1246 = vunpack.c.h.b16 %v890
        %v1247 = vunpack.c.l.b16 %v891
        %v1248 = vunpack.c.h.b16 %v891
        %v1249 = vunpack.c.l.b16 %v892
        %v1250 = vunpack.c.h.b16 %v892
        %v1251 = vunpack.c.l.b16 %v893
        %v1252 = vunpack.c.h.b16 %v893
        %v1253 = vunpack.c.l.b16 %v894
        %v1254 = vunpack.c.h.b16 %v894
        %v1255 = vunpack.c.l.b16 %v895
        %v1256 = vunpack.c.h.b16 %v895
        %v1257 = vunpack.c.l.b16 %v896
        %v1258 = vunpack.c.h.b16 %v896
        %v1259 = vunpack.c.l.b16 %v897
        %v1260 = vunpack.c.h.b16 %v897
        %v1261 = vunpack.c.l.b16 %v898
        %v1262 = vunpack.c.h.b16 %v898
        %v1263 = vunpack.c.l.b16 %v899
        %v1264 = vunpack.c.h.b16 %v899
        %v1265 = vunpack.c.l.b16 %v900
        %v1266 = vunpack.c.h.b16 %v900
        %v1267 = vunpack.c.l.b16 %v901
        %v1268 = vunpack.c.h.b16 %v901
        %v1269 = vunpack.c.l.b16 %v902
        %v1270 = vunpack.c.h.b16 %v902
        %v1271 = vunpack.c.l.b16 %v903
        %v1272 = vunpack.c.h.b16 %v903
        %v1273 = vunpack.c.l.b16 %v904
        %v1274 = vunpack.c.h.b16 %v904
        %v1275 = vunpack.c.l.b16 %v905
        %v1276 = vunpack.c.h.b16 %v905
        %v1277 = vunpack.c.l.b16 %v906
        %v1278 = vunpack.c.h.b16 %v906
        %v1279 = vunpack.c.l.b16 %v907
        %v1280 = vunpack.c.h.b16 %v907
        %v1281 = vunpack.c.l.b16 %v908
        %v1282 = vunpack.c.h.b16 %v908
        %v1283 = vunpack.c.l.b16 %v909
        %v1284 = vunpack.c.h.b16 %v909
        %v1285 = vunpack.c.l.b16 %v910
        %v1286 = vunpack.c.h.b16 %v910
        %v1287 = vpack.c.b16 %v1225, %v1223
        %v1288 = vpack.c.b16 %v1226, %v1224
        %v1289 = vpack.c.b16 %v1229, %v1227
        %v1290 = vpack.c.b16 %v1230, %v1228
        %v1291 = vpack.c.b16 %v1233, %v1231
        %v1292 = vpack.c.b16 %v1234, %v1232
        %v1293 = vpack.c.b16 %v1237, %v1235
        %v1294 = vpack.c.b16 %v1238, %v1236
        %v1295 = vpack.c.b16 %v1241, %v1239
        %v1296 = vpack.c.b16 %v1242, %v1240
        %v1297 = vpack.c.b16 %v1245, %v1243
        %v1298 = vpack.c.b16 %v1246, %v1244
        %v1299 = vpack.c.b16 %v1249, %v1247
        %v1300 = vpack.c.b16 %v1250, %v1248
        %v1301 = vpack.c.b16 %v1253, %v1251
        %v1302 = vpack.c.b16 %v1254, %v1252
        %v1303 = vpack.c.b16 %v1257, %v1255
        %v1304 = vpack.c.b16 %v1258, %v1256
        %v1305 = vpack.c.b16 %v1261, %v1259
        %v1306 = vpack.c.b16 %v1262, %v1260
        %v1307 = vpack.c.b16 %v1265, %v1263
        %v1308 = vpack.c.b16 %v1266, %v1264
        %v1309 = vpack.c.b16 %v1269, %v1267
        %v1310 = vpack.c.b16 %v1270, %v1268
        %v1311 = vpack.c.b16 %v1273, %v1271
        %v1312 = vpack.c.b16 %v1274, %v1272
        %v1313 = vpack.c.b16 %v1277, %v1275
        %v1314 = vpack.c.b16 %v1278, %v1276
        %v1315 = vpack.c.b16 %v1281, %v1279
        %v1316 = vpack.c.b16 %v1282, %v1280
        %v1317 = vpack.c.b16 %v1285, %v1283
        %v1318 = vpack.c.b16 %v1286, %v1284
        %1351 = vmatprep.subr.bf16.mxu0 %v1288
        %1352 = vmatpush1.bf16.msra.mxu0 %v1287
        %1353 = vmatprep.subr.bf16.mxu0 %v1290
        %1354 = vmatpush1.bf16.msra.mxu0 %v1289
        %1355 = vmatprep.subr.bf16.mxu0 %v1292
        %1356 = vmatpush1.bf16.msra.mxu0 %v1291
        %1357 = vmatprep.subr.bf16.mxu0 %v1294
        %1358 = vmatpush1.bf16.msra.mxu0 %v1293
        %1359 = vmatprep.subr.bf16.mxu0 %v1296
        %1360 = vmatpush1.bf16.msra.mxu0 %v1295
        %1361 = vmatprep.subr.bf16.mxu0 %v1298
        %1362 = vmatpush1.bf16.msra.mxu0 %v1297
        %1363 = vmatprep.subr.bf16.mxu0 %v1300
        %1364 = vmatpush1.bf16.msra.mxu0 %v1299
        %1365 = vmatprep.subr.bf16.mxu0 %v1302
        %1366 = vmatpush1.bf16.msra.mxu0 %v1301
        %1367 = vmatprep.subr.bf16.mxu0 %v1304
        %1368 = vmatpush1.bf16.msra.mxu0 %v1303
        %1369 = vmatprep.subr.bf16.mxu0 %v1306
        %1370 = vmatpush1.bf16.msra.mxu0 %v1305
        %1371 = vmatprep.subr.bf16.mxu0 %v1308
        %1372 = vmatpush1.bf16.msra.mxu0 %v1307
        %1373 = vmatprep.subr.bf16.mxu0 %v1310
        %1374 = vmatpush1.bf16.msra.mxu0 %v1309
        %1375 = vmatprep.subr.bf16.mxu0 %v1312
        %1376 = vmatpush1.bf16.msra.mxu0 %v1311
        %1377 = vmatprep.subr.bf16.mxu0 %v1314
        %1378 = vmatpush1.bf16.msra.mxu0 %v1313
        %1379 = vmatprep.subr.bf16.mxu0 %v1316
        %1380 = vmatpush1.bf16.msra.mxu0 %v1315
        %1381 = vmatprep.subr.bf16.mxu0 %v1318
        %1382 = vmatpush1.bf16.msra.mxu0 %v1317
        %1383 = vmatprep.mubr.bf16.mxu0 %v878
        %1384 = vmatmul.mubr.bf16.gmra.mrb[0].mxu0 %v877
        %v1385 = vpop.f32.mrb[0].mxu0
        %v1386 = vadd.f32 %v1185, %v1385
        %v1387 = vpop.f32.mrb[0].mxu0
        %v1388 = vadd.f32 %v1187, %v1387
        %v1389 = vpop.f32.mrb[0].mxu0
        %v1390 = vpop.f32.mrb[0].mxu0
        %1391 = vdwg.mxu0
        %v1392 = vld [vmem:[%s4 + $0x8] sm:$0xf]
        %v1394 = vsel %vm373, %v1392, 0
        %1396 = vmatprep.subr.bf16.mxu0 %v831
        %1397 = vmatpush1.bf16.msra.mxu0 %v830
        %1398 = vmatprep.subr.bf16.mxu0 0
        %1399 = vmatpush1.bf16.msra.mxu0 0
        %1400 = vmatprep.subr.bf16.mxu0 0
        %1401 = vmatpush1.bf16.msra.mxu0 0
        %1402 = vmatprep.subr.bf16.mxu0 0
        %1403 = vmatpush1.bf16.msra.mxu0 0
        %1404 = vmatprep.subr.bf16.mxu0 0
        %1405 = vmatpush1.bf16.msra.mxu0 0
        %1406 = vmatprep.subr.bf16.mxu0 0
        %1407 = vmatpush1.bf16.msra.mxu0 0
        %1408 = vmatprep.subr.bf16.mxu0 0
        %1409 = vmatpush1.bf16.msra.mxu0 0
        %1410 = vmatprep.subr.bf16.mxu0 0
        %1411 = vmatpush1.bf16.msra.mxu0 0
        %1412 = vmatprep.subr.bf16.mxu0 0
        %1413 = vmatpush1.bf16.msra.mxu0 0
        %1414 = vmatprep.subr.bf16.mxu0 0
        %1415 = vmatpush1.bf16.msra.mxu0 0
        %1416 = vmatprep.subr.bf16.mxu0 0
        %1417 = vmatpush1.bf16.msra.mxu0 0
        %1418 = vmatprep.subr.bf16.mxu0 0
        %1419 = vmatpush1.bf16.msra.mxu0 0
        %1420 = vmatprep.subr.bf16.mxu0 0
        %1421 = vmatpush1.bf16.msra.mxu0 0
        %1422 = vmatprep.subr.bf16.mxu0 0
        %1423 = vmatpush1.bf16.msra.mxu0 0
        %1424 = vmatprep.subr.bf16.mxu0 0
        %1425 = vmatpush1.bf16.msra.mxu0 0
        %1426 = vmatprep.subr.bf16.mxu0 0
        %1427 = vmatpush1.bf16.msra.mxu0 0
        %1428 = vmatprep.mubr.bf16.mxu0 0
        %1429 = vmatmul.mubr.bf16.gmra.mrb[0].mxu0 %v1394
        %v1430 = vpop.f32.mrb[0].mxu0
        %v1431 = vadd.f32 0.0, %v1430
        %v1432 = vpop.f32.mrb[0].mxu0
        %v1433 = vadd.f32 0.0, %v1432
        %v1434 = vpop.f32.mrb[0].mxu0
        %v1435 = vpop.f32.mrb[0].mxu0
        %1436 = vdwg.mxu0
        %v1437 = vpack.c.bf16 %v1431, %v1431
        %v1438 = vpack.c.bf16 %v1433, %v1433
        %v1439 = vld [vmem:[%s5 + $0x200] sm:$0xff]
        %v1440 = vld [vmem:[%s5 + $0x208] sm:$0xff]
        %v1441 = vld [vmem:[%s5 + $0x210] sm:$0xff]
        %v1442 = vld [vmem:[%s5 + $0x218] sm:$0xff]
        %v1443 = vld [vmem:[%s5 + $0x220] sm:$0xff]
        %v1444 = vld [vmem:[%s5 + $0x228] sm:$0xff]
        %v1445 = vld [vmem:[%s5 + $0x230] sm:$0xff]
        %v1446 = vld [vmem:[%s5 + $0x238] sm:$0xff]
        %v1447 = vld [vmem:[%s5 + $0x240] sm:$0xff]
        %v1448 = vld [vmem:[%s5 + $0x248] sm:$0xff]
        %v1449 = vld [vmem:[%s5 + $0x250] sm:$0xff]
        %v1450 = vld [vmem:[%s5 + $0x258] sm:$0xff]
        %v1451 = vld [vmem:[%s5 + $0x260] sm:$0xff]
        %v1452 = vld [vmem:[%s5 + $0x268] sm:$0xff]
        %v1453 = vld [vmem:[%s5 + $0x270] sm:$0xff]
        %v1454 = vld [vmem:[%s5 + $0x278] sm:$0xff]
        %v1455 = vld [vmem:[%s5 + $0x280] sm:$0xff]
        %v1456 = vld [vmem:[%s5 + $0x288] sm:$0xff]
        %v1457 = vld [vmem:[%s5 + $0x290] sm:$0xff]
        %v1458 = vld [vmem:[%s5 + $0x298] sm:$0xff]
        %v1459 = vld [vmem:[%s5 + $0x2a0] sm:$0xff]
        %v1460 = vld [vmem:[%s5 + $0x2a8] sm:$0xff]
        %v1461 = vld [vmem:[%s5 + $0x2b0] sm:$0xff]
        %v1462 = vld [vmem:[%s5 + $0x2b8] sm:$0xff]
        %v1463 = vld [vmem:[%s5 + $0x2c0] sm:$0xff]
        %v1464 = vld [vmem:[%s5 + $0x2c8] sm:$0xff]
        %v1465 = vld [vmem:[%s5 + $0x2d0] sm:$0xff]
        %v1466 = vld [vmem:[%s5 + $0x2d8] sm:$0xff]
        %v1467 = vld [vmem:[%s5 + $0x2e0] sm:$0xff]
        %v1468 = vld [vmem:[%s5 + $0x2e8] sm:$0xff]
        %v1469 = vld [vmem:[%s5 + $0x2f0] sm:$0xff]
        %v1470 = vld [vmem:[%s5 + $0x2f8] sm:$0xff]
        %v1503 = vunpack.c.l.b16 %v1439
        %v1504 = vunpack.c.h.b16 %v1439
        %v1505 = vunpack.c.l.b16 %v1440
        %v1506 = vunpack.c.h.b16 %v1440
        %v1507 = vunpack.c.l.b16 %v1441
        %v1508 = vunpack.c.h.b16 %v1441
        %v1509 = vunpack.c.l.b16 %v1442
        %v1510 = vunpack.c.h.b16 %v1442
        %v1511 = vunpack.c.l.b16 %v1443
        %v1512 = vunpack.c.h.b16 %v1443
        %v1513 = vunpack.c.l.b16 %v1444
        %v1514 = vunpack.c.h.b16 %v1444
        %v1515 = vunpack.c.l.b16 %v1445
        %v1516 = vunpack.c.h.b16 %v1445
        %v1517 = vunpack.c.l.b16 %v1446
        %v1518 = vunpack.c.h.b16 %v1446
        %v1519 = vunpack.c.l.b16 %v1447
        %v1520 = vunpack.c.h.b16 %v1447
        %v1521 = vunpack.c.l.b16 %v1448
        %v1522 = vunpack.c.h.b16 %v1448
        %v1523 = vunpack.c.l.b16 %v1449
        %v1524 = vunpack.c.h.b16 %v1449
        %v1525 = vunpack.c.l.b16 %v1450
        %v1526 = vunpack.c.h.b16 %v1450
        %v1527 = vunpack.c.l.b16 %v1451
        %v1528 = vunpack.c.h.b16 %v1451
        %v1529 = vunpack.c.l.b16 %v1452
        %v1530 = vunpack.c.h.b16 %v1452
        %v1531 = vunpack.c.l.b16 %v1453
        %v1532 = vunpack.c.h.b16 %v1453
        %v1533 = vunpack.c.l.b16 %v1454
        %v1534 = vunpack.c.h.b16 %v1454
        %v1535 = vunpack.c.l.b16 %v1455
        %v1536 = vunpack.c.h.b16 %v1455
        %v1537 = vunpack.c.l.b16 %v1456
        %v1538 = vunpack.c.h.b16 %v1456
        %v1539 = vunpack.c.l.b16 %v1457
        %v1540 = vunpack.c.h.b16 %v1457
        %v1541 = vunpack.c.l.b16 %v1458
        %v1542 = vunpack.c.h.b16 %v1458
        %v1543 = vunpack.c.l.b16 %v1459
        %v1544 = vunpack.c.h.b16 %v1459
        %v1545 = vunpack.c.l.b16 %v1460
        %v1546 = vunpack.c.h.b16 %v1460
        %v1547 = vunpack.c.l.b16 %v1461
        %v1548 = vunpack.c.h.b16 %v1461
        %v1549 = vunpack.c.l.b16 %v1462
        %v1550 = vunpack.c.h.b16 %v1462
        %v1551 = vunpack.c.l.b16 %v1463
        %v1552 = vunpack.c.h.b16 %v1463
        %v1553 = vunpack.c.l.b16 %v1464
        %v1554 = vunpack.c.h.b16 %v1464
        %v1555 = vunpack.c.l.b16 %v1465
        %v1556 = vunpack.c.h.b16 %v1465
        %v1557 = vunpack.c.l.b16 %v1466
        %v1558 = vunpack.c.h.b16 %v1466
        %v1559 = vunpack.c.l.b16 %v1467
        %v1560 = vunpack.c.h.b16 %v1467
        %v1561 = vunpack.c.l.b16 %v1468
        %v1562 = vunpack.c.h.b16 %v1468
        %v1563 = vunpack.c.l.b16 %v1469
        %v1564 = vunpack.c.h.b16 %v1469
        %v1565 = vunpack.c.l.b16 %v1470
        %v1566 = vunpack.c.h.b16 %v1470
        %v1567 = vpack.c.b16 %v1505, %v1503
        %v1568 = vpack.c.b16 %v1506, %v1504
        %v1569 = vpack.c.b16 %v1509, %v1507
        %v1570 = vpack.c.b16 %v1510, %v1508
        %v1571 = vpack.c.b16 %v1513, %v1511
        %v1572 = vpack.c.b16 %v1514, %v1512
        %v1573 = vpack.c.b16 %v1517, %v1515
        %v1574 = vpack.c.b16 %v1518, %v1516
        %v1575 = vpack.c.b16 %v1521, %v1519
        %v1576 = vpack.c.b16 %v1522, %v1520
        %v1577 = vpack.c.b16 %v1525, %v1523
        %v1578 = vpack.c.b16 %v1526, %v1524
        %v1579 = vpack.c.b16 %v1529, %v1527
        %v1580 = vpack.c.b16 %v1530, %v1528
        %v1581 = vpack.c.b16 %v1533, %v1531
        %v1582 = vpack.c.b16 %v1534, %v1532
        %v1583 = vpack.c.b16 %v1537, %v1535
        %v1584 = vpack.c.b16 %v1538, %v1536
        %v1585 = vpack.c.b16 %v1541, %v1539
        %v1586 = vpack.c.b16 %v1542, %v1540
        %v1587 = vpack.c.b16 %v1545, %v1543
        %v1588 = vpack.c.b16 %v1546, %v1544
        %v1589 = vpack.c.b16 %v1549, %v1547
        %v1590 = vpack.c.b16 %v1550, %v1548
        %v1591 = vpack.c.b16 %v1553, %v1551
        %v1592 = vpack.c.b16 %v1554, %v1552
        %v1593 = vpack.c.b16 %v1557, %v1555
        %v1594 = vpack.c.b16 %v1558, %v1556
        %v1595 = vpack.c.b16 %v1561, %v1559
        %v1596 = vpack.c.b16 %v1562, %v1560
        %v1597 = vpack.c.b16 %v1565, %v1563
        %v1598 = vpack.c.b16 %v1566, %v1564
        %1631 = vmatprep.subr.bf16.mxu0 %v1568
        %1632 = vmatpush1.bf16.msra.mxu0 %v1567
        %1633 = vmatprep.subr.bf16.mxu0 %v1570
        %1634 = vmatpush1.bf16.msra.mxu0 %v1569
        %1635 = vmatprep.subr.bf16.mxu0 %v1572
        %1636 = vmatpush1.bf16.msra.mxu0 %v1571
        %1637 = vmatprep.subr.bf16.mxu0 %v1574
        %1638 = vmatpush1.bf16.msra.mxu0 %v1573
        %1639 = vmatprep.subr.bf16.mxu0 %v1576
        %1640 = vmatpush1.bf16.msra.mxu0 %v1575
        %1641 = vmatprep.subr.bf16.mxu0 %v1578
        %1642 = vmatpush1.bf16.msra.mxu0 %v1577
        %1643 = vmatprep.subr.bf16.mxu0 %v1580
        %1644 = vmatpush1.bf16.msra.mxu0 %v1579
        %1645 = vmatprep.subr.bf16.mxu0 %v1582
        %1646 = vmatpush1.bf16.msra.mxu0 %v1581
        %1647 = vmatprep.subr.bf16.mxu0 %v1584
        %1648 = vmatpush1.bf16.msra.mxu0 %v1583
        %1649 = vmatprep.subr.bf16.mxu0 %v1586
        %1650 = vmatpush1.bf16.msra.mxu0 %v1585
        %1651 = vmatprep.subr.bf16.mxu0 %v1588
        %1652 = vmatpush1.bf16.msra.mxu0 %v1587
        %1653 = vmatprep.subr.bf16.mxu0 %v1590
        %1654 = vmatpush1.bf16.msra.mxu0 %v1589
        %1655 = vmatprep.subr.bf16.mxu0 %v1592
        %1656 = vmatpush1.bf16.msra.mxu0 %v1591
        %1657 = vmatprep.subr.bf16.mxu0 %v1594
        %1658 = vmatpush1.bf16.msra.mxu0 %v1593
        %1659 = vmatprep.subr.bf16.mxu0 %v1596
        %1660 = vmatpush1.bf16.msra.mxu0 %v1595
        %1661 = vmatprep.subr.bf16.mxu0 %v1598
        %1662 = vmatpush1.bf16.msra.mxu0 %v1597
        %1663 = vmatprep.mubr.bf16.mxu0 %v1438
        %1664 = vmatmul.mubr.bf16.gmra.mrb[0].mxu0 %v1437
        %v1665 = vpop.f32.mrb[0].mxu0
        %v1666 = vadd.f32 0.0, %v1665
        %v1667 = vpop.f32.mrb[0].mxu0
        %v1668 = vadd.f32 0.0, %v1667
        %v1669 = vpop.f32.mrb[0].mxu0
        %v1670 = vpop.f32.mrb[0].mxu0
        %1671 = vdwg.mxu0
        %v1672 = vadd.f32 %v1386, %v1666
        %v1673 = vadd.f32 %v1388, %v1668
        %v1674 = vld [vmem:[%s6] sm:$0x3]
        %v1676 = vlaneseq
        %v1677 = vshrl.u32 %v1676, 7
        %v1678 = vsub.s32 0, %v1677
        %v1679 = vrot.slane %v1674, %v1678
        %v1680 = vlaneseq
        %v1681 = vshrl.u32 %v1680, 7
        %v1682 = vsub.s32 1, %v1681
        %v1683 = vrot.slane %v1674, %v1682
        %v1686 = vadd.f32 %v1672, %v1679
        %v1687 = vadd.f32 %v1673, %v1683
        %v1688 = vmax.f32 %v1686, 0.0
        %v1689 = vmax.f32 %v1687, 0.0
        %v1690 = vpack.c.bf16 %v1688, %v1688
        %v1691 = vpack.c.bf16 %v1689, %v1689
        %v1692 = vld [vmem:[%s7] sm:$0x1]
        %vm1693 = vcmask 64512
        %v1695 = vsel %vm1693, %v1692, 0
        %vm1697 = vcmask 1043456
        %v1699 = vsel %vm1697, %v1690, 0
        %v1702 = vsel %vm1697, %v1691, 0
        %1704 = vmatprep.subr.bf16.mxu0 %v1702
        %1705 = vmatpush1.bf16.msra.mxu0 %v1699
        %1706 = vmatprep.subr.bf16.mxu0 0
        %1707 = vmatpush1.bf16.msra.mxu0 0
        %1708 = vmatprep.subr.bf16.mxu0 0
        %1709 = vmatpush1.bf16.msra.mxu0 0
        %1710 = vmatprep.subr.bf16.mxu0 0
        %1711 = vmatpush1.bf16.msra.mxu0 0
        %1712 = vmatprep.subr.bf16.mxu0 0
        %1713 = vmatpush1.bf16.msra.mxu0 0
        %1714 = vmatprep.subr.bf16.mxu0 0
        %1715 = vmatpush1.bf16.msra.mxu0 0
        %1716 = vmatprep.subr.bf16.mxu0 0
        %1717 = vmatpush1.bf16.msra.mxu0 0
        %1718 = vmatprep.subr.bf16.mxu0 0
        %1719 = vmatpush1.bf16.msra.mxu0 0
        %1720 = vmatprep.subr.bf16.mxu0 0
        %1721 = vmatpush1.bf16.msra.mxu0 0
        %1722 = vmatprep.subr.bf16.mxu0 0
        %1723 = vmatpush1.bf16.msra.mxu0 0
        %1724 = vmatprep.subr.bf16.mxu0 0
        %1725 = vmatpush1.bf16.msra.mxu0 0
        %1726 = vmatprep.subr.bf16.mxu0 0
        %1727 = vmatpush1.bf16.msra.mxu0 0
        %1728 = vmatprep.subr.bf16.mxu0 0
        %1729 = vmatpush1.bf16.msra.mxu0 0
        %1730 = vmatprep.subr.bf16.mxu0 0
        %1731 = vmatpush1.bf16.msra.mxu0 0
        %1732 = vmatprep.subr.bf16.mxu0 0
        %1733 = vmatpush1.bf16.msra.mxu0 0
        %1734 = vmatprep.subr.bf16.mxu0 0
        %1735 = vmatpush1.bf16.msra.mxu0 0
        %1736 = vmatprep.mubr.bf16.mxu0 0
        %1737 = vmatmul.mubr.bf16.gmra.mrb[0].mxu0 %v1695
        %v1738 = vpop.f32.mrb[0].mxu0
        %v1739 = vadd.f32 0.0, %v1738
        %v1740 = vpop.f32.mrb[0].mxu0
        %v1741 = vadd.f32 0.0, %v1740
        %v1742 = vpop.f32.mrb[0].mxu0
        %v1743 = vpop.f32.mrb[0].mxu0
        %1744 = vdwg.mxu0
        %v1745 = vpack.c.bf16 %v1739, %v1739
        %v1746 = vpack.c.bf16 %v1741, %v1741
        %v1747 = vld [vmem:[%s8] sm:$0xf]
        %v1748 = vld [vmem:[%s8 + $0x4] sm:$0xf]
        %v1749 = vld [vmem:[%s8 + $0x8] sm:$0xf]
        %v1750 = vld [vmem:[%s8 + $0xc] sm:$0xf]
        %v1751 = vld [vmem:[%s8 + $0x10] sm:$0xf]
        %v1752 = vld [vmem:[%s8 + $0x14] sm:$0xf]
        %v1753 = vld [vmem:[%s8 + $0x18] sm:$0xf]
        %v1754 = vld [vmem:[%s8 + $0x1c] sm:$0xf]
        %v1755 = vld [vmem:[%s8 + $0x20] sm:$0xf]
        %v1756 = vld [vmem:[%s8 + $0x24] sm:$0xf]
        %v1757 = vld [vmem:[%s8 + $0x28] sm:$0xf]
        %v1758 = vld [vmem:[%s8 + $0x2c] sm:$0xf]
        %v1759 = vld [vmem:[%s8 + $0x30] sm:$0xf]
        %v1760 = vld [vmem:[%s8 + $0x34] sm:$0xf]
        %v1761 = vld [vmem:[%s8 + $0x38] sm:$0xf]
        %v1762 = vld [vmem:[%s8 + $0x3c] sm:$0xf]
        %v1763 = vld [vmem:[%s8 + $0x40] sm:$0xf]
        %v1764 = vld [vmem:[%s8 + $0x44] sm:$0xf]
        %v1765 = vld [vmem:[%s8 + $0x48] sm:$0xf]
        %v1766 = vld [vmem:[%s8 + $0x4c] sm:$0xf]
        %v1767 = vld [vmem:[%s8 + $0x50] sm:$0xf]
        %v1768 = vld [vmem:[%s8 + $0x54] sm:$0xf]
        %v1769 = vld [vmem:[%s8 + $0x58] sm:$0xf]
        %v1770 = vld [vmem:[%s8 + $0x5c] sm:$0xf]
        %v1771 = vld [vmem:[%s8 + $0x60] sm:$0xf]
        %v1772 = vld [vmem:[%s8 + $0x64] sm:$0xf]
        %v1773 = vld [vmem:[%s8 + $0x68] sm:$0xf]
        %v1774 = vld [vmem:[%s8 + $0x6c] sm:$0xf]
        %v1775 = vld [vmem:[%s8 + $0x70] sm:$0xf]
        %v1776 = vld [vmem:[%s8 + $0x74] sm:$0xf]
        %v1777 = vld [vmem:[%s8 + $0x78] sm:$0xf]
        %v1778 = vld [vmem:[%s8 + $0x7c] sm:$0xf]
        %v1779 = vld [vmem:[%s9] sm:$0x1]
        %v1812 = vunpack.c.l.b16 %v1747
        %v1813 = vunpack.c.l.b16 %v1748
        %v1814 = vunpack.c.l.b16 %v1749
        %v1815 = vunpack.c.l.b16 %v1750
        %v1816 = vunpack.c.l.b16 %v1751
        %v1817 = vunpack.c.l.b16 %v1752
        %v1818 = vunpack.c.l.b16 %v1753
        %v1819 = vunpack.c.l.b16 %v1754
        %v1820 = vunpack.c.l.b16 %v1755
        %v1821 = vunpack.c.l.b16 %v1756
        %v1822 = vunpack.c.l.b16 %v1757
        %v1823 = vunpack.c.l.b16 %v1758
        %v1824 = vunpack.c.l.b16 %v1759
        %v1825 = vunpack.c.l.b16 %v1760
        %v1826 = vunpack.c.l.b16 %v1761
        %v1827 = vunpack.c.l.b16 %v1762
        %v1828 = vunpack.c.l.b16 %v1763
        %v1829 = vunpack.c.l.b16 %v1764
        %v1830 = vunpack.c.l.b16 %v1765
        %v1831 = vunpack.c.l.b16 %v1766
        %v1832 = vunpack.c.l.b16 %v1767
        %v1833 = vunpack.c.l.b16 %v1768
        %v1834 = vunpack.c.l.b16 %v1769
        %v1835 = vunpack.c.l.b16 %v1770
        %v1836 = vunpack.c.l.b16 %v1771
        %v1837 = vunpack.c.l.b16 %v1772
        %v1838 = vunpack.c.l.b16 %v1773
        %v1839 = vunpack.c.l.b16 %v1774
        %v1840 = vunpack.c.l.b16 %v1775
        %v1841 = vunpack.c.l.b16 %v1776
        %v1842 = vunpack.c.l.b16 %v1777
        %v1843 = vunpack.c.l.b16 %v1778
        %v1844 = vpack.c.b16 %v1813, %v1812
        %v1845 = vpack.c.b16 %v1815, %v1814
        %v1846 = vpack.c.b16 %v1817, %v1816
        %v1847 = vpack.c.b16 %v1819, %v1818
        %v1848 = vpack.c.b16 %v1821, %v1820
        %v1849 = vpack.c.b16 %v1823, %v1822
        %v1850 = vpack.c.b16 %v1825, %v1824
        %v1851 = vpack.c.b16 %v1827, %v1826
        %v1852 = vpack.c.b16 %v1829, %v1828
        %v1853 = vpack.c.b16 %v1831, %v1830
        %v1854 = vpack.c.b16 %v1833, %v1832
        %v1855 = vpack.c.b16 %v1835, %v1834
        %v1856 = vpack.c.b16 %v1837, %v1836
        %v1857 = vpack.c.b16 %v1839, %v1838
        %v1858 = vpack.c.b16 %v1841, %v1840
        %v1859 = vpack.c.b16 %v1843, %v1842
        %1876 = vmatprep.subr.bf16.mxu0 0
        %1877 = vmatpush1.bf16.msra.mxu0 %v1844
        %1878 = vmatprep.subr.bf16.mxu0 0
        %1879 = vmatpush1.bf16.msra.mxu0 %v1845
        %1880 = vmatprep.subr.bf16.mxu0 0
        %1881 = vmatpush1.bf16.msra.mxu0 %v1846
        %1882 = vmatprep.subr.bf16.mxu0 0
        %1883 = vmatpush1.bf16.msra.mxu0 %v1847
        %1884 = vmatprep.subr.bf16.mxu0 0
        %1885 = vmatpush1.bf16.msra.mxu0 %v1848
        %1886 = vmatprep.subr.bf16.mxu0 0
        %1887 = vmatpush1.bf16.msra.mxu0 %v1849
        %1888 = vmatprep.subr.bf16.mxu0 0
        %1889 = vmatpush1.bf16.msra.mxu0 %v1850
        %1890 = vmatprep.subr.bf16.mxu0 0
        %1891 = vmatpush1.bf16.msra.mxu0 %v1851
        %1892 = vmatprep.subr.bf16.mxu0 0
        %1893 = vmatpush1.bf16.msra.mxu0 %v1852
        %1894 = vmatprep.subr.bf16.mxu0 0
        %1895 = vmatpush1.bf16.msra.mxu0 %v1853
        %1896 = vmatprep.subr.bf16.mxu0 0
        %1897 = vmatpush1.bf16.msra.mxu0 %v1854
        %1898 = vmatprep.subr.bf16.mxu0 0
        %1899 = vmatpush1.bf16.msra.mxu0 %v1855
        %1900 = vmatprep.subr.bf16.mxu0 0
        %1901 = vmatpush1.bf16.msra.mxu0 %v1856
        %1902 = vmatprep.subr.bf16.mxu0 0
        %1903 = vmatpush1.bf16.msra.mxu0 %v1857
        %1904 = vmatprep.subr.bf16.mxu0 0
        %1905 = vmatpush1.bf16.msra.mxu0 %v1858
        %1906 = vmatprep.subr.bf16.mxu0 0
        %1907 = vmatpush1.bf16.msra.mxu0 %v1859
        %1908 = vmatprep.mubr.bf16.mxu0 %v1746
        %1909 = vmatmul.mubr.bf16.gmra.mrb[0].mxu0 %v1745
        %v1910 = vpop.f32.mrb[0].mxu0
        %v1911 = vadd.f32 %v1779, %v1910
        %v1912 = vpop.f32.mrb[0].mxu0
        %v1913 = vpop.f32.mrb[0].mxu0
        %v1914 = vpop.f32.mrb[0].mxu0
        %1915 = vdwg.mxu0
        %1916 = vst [vmem:[%s351] sm:$0x1] %v1911
        %s1917 = sand.u32 %s247, 1
        %s1918 = scalar_lea.sflag [#allocation3], %s1917
        %s1919 = sand.u32 %s247, 1
        %s1920 = scalar_lea.vmem [#allocation2], %s1919
        // Predicated region
        $region61: #{mammo_clip_forward.1} parent=59 // pred_check
          %p1921 = pneg %p257
        $region62: #{mammo_clip_forward.1} parent=59 // pred_check_branch
          %1923 = sbr.rel (%p1921) target = $region64
        $region63: #{mammo_clip_forward.1} parent=59 // pred_region
          %s1925 = ssub.s32 16, 16
          %1926 = vsyncadd %s1918, %s1925
          %s1927 = smul.addr %s24, 16
          %s1928 = scalar_lea.hbm %s10, %s1927
          %s1930 = sshll.u32 %s1920, 4
          %s1931 = int_to_ptr.vmem [resolvable:$true] %s1930
          %1933 = dma.vmem_to_hbm [thread:$0]  %s1931, 16, %s1928, %s1918
        $region64: #{mammo_clip_forward.1} parent=59 // pred_fallthru
          _
      $region60: #{mammo_clip_forward.1} parent=5 // pred_fallthru
        _
      %p1934 = scmp.le.s32.totalorder 2, %s19
      // Predicated region
      $region65: #{mammo_clip_forward.1} parent=5 // pred_check
        %p1935 = pneg %p1934
      $region66: #{mammo_clip_forward.1} parent=5 // pred_check_branch
        %1937 = sbr.rel (%p1935) target = $region68
      $region67: #{mammo_clip_forward.1} parent=5 // pred_region
        %s1938 = ssub.s32 %s19, 2
        // Predicated region
        $region69: #{mammo_clip_forward.1} parent=67 // pred_check
          %p1939 = pneg %p263
        $region70: #{mammo_clip_forward.1} parent=67 // pred_check_branch
          %1941 = sbr.rel (%p1939) target = $region72
        $region71: #{mammo_clip_forward.1} parent=67 // pred_region
          %s1942 = sand.u32 %s248, 1
          %s1943 = scalar_lea.sflag [#allocation3], %s1942
          %s1944 = sand.u32 %s248, 1
          %s1945 = scalar_lea.vmem [#allocation2], %s1944
          %1946 = dma.done %s1943, 16
        $region72: #{mammo_clip_forward.1} parent=67 // pred_fallthru
          _
      $region68: #{mammo_clip_forward.1} parent=5 // pred_fallthru
        _
    $region6: #{mammo_clip_forward.1} parent=1 // loop_footer
      %s23 = sadd.s32 1, %s19
    $region7: #{mammo_clip_forward.1} parent=1 // loop_footer_branch
      %18 = sbr.rel target = $region3
    $region8: #{mammo_clip_forward.1} parent=1 // loop_exit
      _
    %1947 = vsyncpa [#allocation3], 1
    %s1948 = scalar_lea.sflag [#allocation3], 1
    %1949 = vsyncpa %s1948, 1

</llo_original>
